<compile_context>
chip_gen: v7x
topology: tpu7x:2x2x1
jax: 0.10.0
libtpu: 0.0.40
codegen_flags: <defaults>
</compile_context>

<pallas_src>
import functools

import jax
import jax.numpy as jnp
from jax import lax
from jax.experimental import pallas as pl
from jax.experimental.pallas import tpu as pltpu

LN_EPS = 1e-5


# ----------------------------- VMEM budgeting --------------------------------

def _vmem_budget_bytes():
    cap = None
    try:
        info = pltpu.get_tpu_info()
        cap = getattr(info, "vmem_capacity_bytes", None)
    except Exception:
        cap = None
    if not cap:
        cap = 64 * 1024 * 1024          # assume the smallest (v7x per-core) VMEM
    # leave headroom for Mosaic internal scratch / bookkeeping
    return min(int(cap * 3 // 4), 96 * 1024 * 1024)


_VMEM_BUDGET = _vmem_budget_bytes()


def _vmem_footprint(tm, tn, C, kg, op_bytes, out_bytes):
    """Estimated VMEM use for one grid step (double-buffered blocks +
    in-kernel f32 intermediates)."""
    fixed = (2 * C * tn * op_bytes            # weight block, double buffered
             + 2 * 2 * tn * kg * 4            # gsum + gbc, double buffered
             + 2 * 2 * tn * 4)                # gamma + beta, double buffered
    per_row = (2 * C * op_bytes               # x block, double buffered
               + 2 * tn * out_bytes           # out block, double buffered
               + 6 * tn * 4)                  # (tm, tn) f32 intermediates (y, y*y, broadcasts, result)
    return fixed + tm * per_row


def _choose_tiles(M, C, op_bytes, out_bytes, budget, groups_per_tile=None):
    """Pick (tm rows, tn = kg*C columns, kg groups per tile, n_row_steps)."""
    if groups_per_tile is None:
        # Widest column tile (fewest weight re-reads) that still leaves room
        # for at least 64 rows.  kg < 16 requires tn to be lane-aligned (128).
        cands = [16] + [g for g in (8, 4, 2, 1) if (g * C) % 128 == 0]
        kg = cands[-1]
        for cand in cands:
            if _vmem_footprint(64, cand * C, C, cand, op_bytes, out_bytes) <= budget:
                kg = cand
                break
    else:
        kg = int(groups_per_tile)
        if 16 % kg != 0:
            raise ValueError("groups_per_tile must divide 16")
        if kg != 16 and (kg * C) % 128 != 0:
            raise ValueError("kg*C must be a multiple of 128 when kg < 16")
    tn = kg * C

    tm = 1024
    while tm > 8 and _vmem_footprint(tm, tn, C, kg, op_bytes, out_bytes) > budget:
        tm //= 2
    # keep >= 8 row steps when possible: pipelining + v7x megacore sharding
    while tm > 8 and pl.cdiv(M, tm) < 8:
        tm //= 2
    n_rows = pl.cdiv(M, tm)
    # trim tm so the last block is not mostly padding
    tm = max(8, min(tm, ((pl.cdiv(M, n_rows) + 7) // 8) * 8))
    return tm, tn, kg, n_rows


# ------------------------------ Pallas kernel --------------------------------

def _expand_ln_kernel(x_ref, w_ref, gsum_ref, gbc_ref, gamma_ref, beta_ref,
                      o_ref, *, inv_c, eps):
    # x_ref: (tm, C)   w_ref: (C, tn)   tn = kg * C (whole LN groups)
    # gsum_ref: (tn, kg) 0/1 group-sum matrix, gbc_ref = gsum.T (broadcast)
    # gamma_ref / beta_ref: (1, tn) = LN affine tiled over the kg groups
    y = jnp.dot(x_ref[...], w_ref[...],
                preferred_element_type=jnp.float32)                  # (tm, tn) f32

    gsum = gsum_ref[...]
    # back-to-back reduction matmuls (E[y] and E[y^2]) on the otherwise idle MXU
    ysum = jnp.dot(y, gsum, preferred_element_type=jnp.float32)      # (tm, kg)
    ysq = jnp.dot(y * y, gsum, preferred_element_type=jnp.float32)   # (tm, kg)
    mean = ysum * inv_c
    var = jnp.maximum(ysq * inv_c - mean * mean, 0.0)
    rstd = lax.rsqrt(var + eps)

    gbc = gbc_ref[...]
    scale_b = jnp.dot(rstd, gbc, preferred_element_type=jnp.float32)        # rstd broadcast
    shift_b = jnp.dot(mean * rstd, gbc, preferred_element_type=jnp.float32) # mean*rstd broadcast

    # (y - mean)*rstd*gamma + beta  ==  (y*rstd_b - (mean*rstd)_b)*gamma + beta
    o_ref[...] = ((y * scale_b - shift_b) * gamma_ref[...]
                  + beta_ref[...]).astype(o_ref.dtype)


# ------------------------------ kernel wrapper --------------------------------

def _fused_expand_layernorm(x, w, gamma, beta, *, compute_dtype, out_dtype,
                            groups_per_tile=None, eps=LN_EPS):
    """x: (M, C) tokens -> (M, 16C) where every contiguous C-wide group of the
    last axis has been LayerNorm'ed (gamma/beta over C)."""
    M, C = x.shape
    N = 16 * C
    op_bytes = jnp.dtype(compute_dtype).itemsize
    out_bytes = jnp.dtype(out_dtype).itemsize

    tm, tn, kg, n_rows = _choose_tiles(M, C, op_bytes, out_bytes, _VMEM_BUDGET,
                                       groups_per_tile)
    n_cols = 16 // kg
    M_pad = n_rows * tm

    x = x.astype(compute_dtype)
    if M_pad != M:
        x = jnp.pad(x, ((0, M_pad - M), (0, 0)))
    w = w.astype(compute_dtype)

    grp = jnp.repeat(jnp.arange(kg, dtype=jnp.int32), C)                  # (tn,)
    gsum = (grp[:, None] == jnp.arange(kg, dtype=jnp.int32)[None, :])
    gsum = gsum.astype(jnp.float32)                                       # (tn, kg)
    gbc = gsum.T                                                          # (kg, tn)
    gamma_t = jnp.tile(gamma.astype(jnp.float32), kg).reshape(1, tn)
    beta_t = jnp.tile(beta.astype(jnp.float32), kg).reshape(1, tn)

    out = pl.pallas_call(
        functools.partial(_expand_ln_kernel, inv_c=1.0 / C, eps=eps),
        grid=(n_rows, n_cols),
        in_specs=[
            pl.BlockSpec((tm, C), lambda i, j: (i, 0)),    # x row tile (const over j)
            pl.BlockSpec((C, tn), lambda i, j: (0, j)),    # expand-weight column tile
            pl.BlockSpec((tn, kg), lambda i, j: (0, 0)),   # group-sum matrix
            pl.BlockSpec((kg, tn), lambda i, j: (0, 0)),   # group-broadcast matrix
            pl.BlockSpec((1, tn), lambda i, j: (0, 0)),    # tiled gamma
            pl.BlockSpec((1, tn), lambda i, j: (0, 0)),    # tiled beta
        ],
        out_specs=pl.BlockSpec((tm, tn), lambda i, j: (i, j)),
        out_shape=jax.ShapeDtypeStruct((M_pad, N), out_dtype),
        compiler_params=pltpu.CompilerParams(
            dimension_semantics=("parallel", "parallel"),
            vmem_limit_bytes=_VMEM_BUDGET,
        ),
    )(x, w, gsum, gbc, gamma_t, beta_t)

    return out[:M] if M_pad != M else out


# ---------------------------------- forward -----------------------------------

@functools.partial(jax.jit, static_argnames=("compute_dtype", "out_dtype",
                                              "output_layout", "groups_per_tile"))
def final_patch_expand_x4_forward(params, x_nchw, *,
                                  compute_dtype=jnp.float32,
                                  out_dtype=jnp.float32,
                                  output_layout="NCHW",
                                  groups_per_tile=None):
    """Eval-mode forward of FinalPatchExpand_X4.
    x: (B, C, H, W) -> (B, C, 4H, 4W)   (or (B, 4H, 4W, C) with output_layout="NHWC").
    For mem-bound production shapes pass compute_dtype/out_dtype = jnp.bfloat16."""
    B, C, H, W = x_nchw.shape
    # NCHW -> token matrix (B*H*W, C).  This is a separate small XLA transpose
    # (1/16 of the output traffic); it does NOT fuse into the Pallas input DMA.
    x = jnp.transpose(x_nchw, (0, 2, 3, 1)).reshape(B * H * W, C)

    # Linear(C -> 16C, no bias) + grouped LayerNorm(C), fused in one kernel.
    y = _fused_expand_layernorm(x, params["expand_w"], params["ln_g"],
                                params["ln_b"], compute_dtype=compute_dtype,
                                out_dtype=out_dtype,
                                groups_per_tile=groups_per_tile)

    y = y.reshape(B, H, W, 4, 4, C)
    if output_layout == "NHWC":
        # pixel-shuffle only; consumers that accept channels-last skip the
        # (more expensive) NCHW permute entirely.
        return jnp.transpose(y, (0, 1, 3, 2, 4, 5)).reshape(B, 4 * H, 4 * W, C)
    # pixel-shuffle + NCHW permute composed into ONE 6-D transpose (the single
    # remaining full pass over the 16C-sized tensor).
    return jnp.transpose(y, (0, 5, 1, 3, 2, 4)).reshape(B, C, 4 * H, 4 * W)


# ----------------------------- pure-JAX reference ------------------------------

def _reference_forward(params, x_nchw, eps=LN_EPS):
    B, C, H, W = x_nchw.shape
    x = jnp.transpose(x_nchw, (0, 2, 3, 1)).reshape(B, H * W, C)
    x = jnp.einsum("bnc,cd->bnd", x, params["expand_w"])          # (B, HW, 16C)
    x = x.reshape(B, H, W, 4, 4, C)
    x = jnp.transpose(x, (0, 1, 3, 2, 4, 5)).reshape(B, 16 * H * W, C)
    mu = jnp.mean(x, axis=-1, keepdims=True)
    var = jnp.mean((x - mu) ** 2, axis=-1, keepdims=True)
    x = (x - mu) / jnp.sqrt(var + eps) * params["ln_g"] + params["ln_b"]
    x = x.reshape(B, 4 * H, 4 * W, C)
    return jnp.transpose(x, (0, 3, 1, 2))


# ------------------------------------ main -------------------------------------

if __name__ == "__main__":
    # dim=32 (16*dim = 512 lanes -> lane-dense stores), batch=2, spatial 16x16.
    B, C, H, W = 2, 32, 16, 16
    key = jax.random.PRNGKey(0)
    k1, k2, k3, k4 = jax.random.split(key, 4)

    params = dict(
        expand_w=0.02 * jax.random.normal(k1, (C, 16 * C), jnp.float32),
        ln_g=1.0 + 0.1 * jax.random.normal(k2, (C,), jnp.float32),
        ln_b=0.1 * jax.random.normal(k3, (C,), jnp.float32),
    )
    x = jax.random.normal(k4, (B, C, H, W), jnp.float32)

    ref = jax.block_until_ready(_reference_forward(params, x))

    # 1) exact f32 path (module-faithful numerics), tight tolerance
    out = jax.block_until_ready(final_patch_expand_x4_forward(params, x))
    assert out.shape == (B, C, 4 * H, 4 * W), out.shape
    assert bool(jnp.all(jnp.isfinite(out)))
    err = float(jnp.max(jnp.abs(out - ref)))
    assert err < 1e-4, f"f32 path max abs err vs reference: {err}"

    # 2) column-tiled path (exercises the N-axis grid split used for large C)
    out_tiled = jax.block_until_ready(
        final_patch_expand_x4_forward(params, x, groups_per_tile=4))
    err_t = float(jnp.max(jnp.abs(out_tiled - ref)))
    assert err_t < 1e-4, f"column-tiled path max abs err vs reference: {err_t}"

    # 3) bf16 fast path (operands + output in bf16, f32 accumulation / LN math)
    out_bf = jax.block_until_ready(final_patch_expand_x4_forward(
        params, x, compute_dtype=jnp.bfloat16, out_dtype=jnp.bfloat16))
    assert out_bf.dtype == jnp.bfloat16
    err_bf = float(jnp.max(jnp.abs(out_bf.astype(jnp.float32) - ref)))
    assert err_bf < 1e-1, f"bf16 path max abs err vs reference: {err_bf}"

    print("KERNEL_OK")
</pallas_src>

<mosaic_0001>
module attributes {stable_mosaic.version = 11 : i64} {
  func.func @_expand_ln_kernel(%arg0: i32, %arg1: i32, %arg2: memref<64x32xf32, #tpu.memory_space<vmem>>, %arg3: memref<32x512xf32, #tpu.memory_space<vmem>>, %arg4: memref<512x16xf32, #tpu.memory_space<vmem>>, %arg5: memref<16x512xf32, #tpu.memory_space<vmem>>, %arg6: memref<1x512xf32, #tpu.memory_space<vmem>>, %arg7: memref<1x512xf32, #tpu.memory_space<vmem>>, %arg8: memref<64x512xf32, #tpu.memory_space<vmem>>) attributes {dimension_semantics = [#tpu.dimension_semantics<parallel>, #tpu.dimension_semantics<parallel>], iteration_bounds = array<i64: 8, 1>, scalar_prefetch = 0 : i64, scratch_operands = 0 : i64, tpu.core_type = #tpu.core_type<tc>, window_params = [{transform_indices = @transform_0, window_bounds = array<i64: 64, 32>}, {transform_indices = @transform_1, window_bounds = array<i64: 32, 512>}, {pipeline_mode = #tpu.pipeline_mode<synchronous>, transform_indices = @transform_2, window_bounds = array<i64: 512, 16>}, {pipeline_mode = #tpu.pipeline_mode<synchronous>, transform_indices = @transform_3, window_bounds = array<i64: 16, 512>}, {pipeline_mode = #tpu.pipeline_mode<synchronous>, transform_indices = @transform_4, window_bounds = array<i64: 1, 512>}, {pipeline_mode = #tpu.pipeline_mode<synchronous>, transform_indices = @transform_5, window_bounds = array<i64: 1, 512>}, {transform_indices = @transform_6, window_bounds = array<i64: 64, 512>}]} {
    %c0 = arith.constant 0 : index
    %c0_0 = arith.constant 0 : index
    %0 = vector.load %arg2[%c0, %c0_0] : memref<64x32xf32, #tpu.memory_space<vmem>>, vector<64x32xf32>
    %c0_1 = arith.constant 0 : index
    %c0_2 = arith.constant 0 : index
    %1 = vector.load %arg3[%c0_1, %c0_2] : memref<32x512xf32, #tpu.memory_space<vmem>>, vector<32x512xf32>
    %cst = arith.constant dense<0.000000e+00> : vector<64x512xf32>
    %2 = tpu.matmul %0, %1, %cst {dimension_numbers = #tpu.dot_dimension_numbers<[1], [0], [0], [1], [0, 0, 1, 1], [], []>} : vector<64x32xf32>, vector<32x512xf32>, vector<64x512xf32> -> vector<64x512xf32>
    %c0_3 = arith.constant 0 : index
    %c0_4 = arith.constant 0 : index
    %3 = vector.load %arg4[%c0_3, %c0_4] : memref<512x16xf32, #tpu.memory_space<vmem>>, vector<512x16xf32>
    %cst_5 = arith.constant dense<0.000000e+00> : vector<64x16xf32>
    %4 = tpu.matmul %2, %3, %cst_5 {dimension_numbers = #tpu.dot_dimension_numbers<[1], [0], [0], [1], [0, 0, 1, 1], [], []>} : vector<64x512xf32>, vector<512x16xf32>, vector<64x16xf32> -> vector<64x16xf32>
    %5 = arith.mulf %2, %2 : vector<64x512xf32>
    %cst_6 = arith.constant dense<0.000000e+00> : vector<64x16xf32>
    %6 = tpu.matmul %5, %3, %cst_6 {dimension_numbers = #tpu.dot_dimension_numbers<[1], [0], [0], [1], [0, 0, 1, 1], [], []>} : vector<64x512xf32>, vector<512x16xf32>, vector<64x16xf32> -> vector<64x16xf32>
    %cst_7 = arith.constant 3.125000e-02 : f32
    %7 = vector.broadcast %cst_7 : f32 to vector<64x16xf32>
    %8 = arith.mulf %4, %7 : vector<64x16xf32>
    %cst_8 = arith.constant 3.125000e-02 : f32
    %9 = vector.broadcast %cst_8 : f32 to vector<64x16xf32>
    %10 = arith.mulf %6, %9 : vector<64x16xf32>
    %11 = arith.mulf %8, %8 : vector<64x16xf32>
    %12 = arith.subf %10, %11 : vector<64x16xf32>
    %cst_9 = arith.constant 0.000000e+00 : f32
    %13 = vector.broadcast %cst_9 : f32 to vector<64x16xf32>
    %14 = arith.maximumf %12, %13 : vector<64x16xf32>
    %cst_10 = arith.constant 9.99999974E-6 : f32
    %15 = vector.broadcast %cst_10 : f32 to vector<64x16xf32>
    %16 = arith.addf %14, %15 : vector<64x16xf32>
    %17 = math.rsqrt %16 : vector<64x16xf32>
    %c0_11 = arith.constant 0 : index
    %c0_12 = arith.constant 0 : index
    %18 = vector.load %arg5[%c0_11, %c0_12] : memref<16x512xf32, #tpu.memory_space<vmem>>, vector<16x512xf32>
    %cst_13 = arith.constant dense<0.000000e+00> : vector<64x512xf32>
    %19 = tpu.matmul %17, %18, %cst_13 {dimension_numbers = #tpu.dot_dimension_numbers<[1], [0], [0], [1], [0, 0, 1, 1], [], []>} : vector<64x16xf32>, vector<16x512xf32>, vector<64x512xf32> -> vector<64x512xf32>
    %20 = arith.mulf %8, %17 : vector<64x16xf32>
    %cst_14 = arith.constant dense<0.000000e+00> : vector<64x512xf32>
    %21 = tpu.matmul %20, %18, %cst_14 {dimension_numbers = #tpu.dot_dimension_numbers<[1], [0], [0], [1], [0, 0, 1, 1], [], []>} : vector<64x16xf32>, vector<16x512xf32>, vector<64x512xf32> -> vector<64x512xf32>
    %22 = arith.mulf %2, %19 : vector<64x512xf32>
    %23 = arith.subf %22, %21 : vector<64x512xf32>
    %c0_15 = arith.constant 0 : index
    %c0_16 = arith.constant 0 : index
    %24 = vector.load %arg6[%c0_15, %c0_16] : memref<1x512xf32, #tpu.memory_space<vmem>>, vector<1x512xf32>
    %25 = vector.broadcast %24 : vector<1x512xf32> to vector<64x512xf32>
    %26 = arith.mulf %23, %25 : vector<64x512xf32>
    %c0_17 = arith.constant 0 : index
    %c0_18 = arith.constant 0 : index
    %27 = vector.load %arg7[%c0_17, %c0_18] : memref<1x512xf32, #tpu.memory_space<vmem>>, vector<1x512xf32>
    %28 = vector.broadcast %27 : vector<1x512xf32> to vector<64x512xf32>
    %29 = arith.addf %26, %28 : vector<64x512xf32>
    %c0_19 = arith.constant 0 : index
    %c0_20 = arith.constant 0 : index
    %30 = vector.load %arg8[%c0_19, %c0_20] : memref<64x512xf32, #tpu.memory_space<vmem>>, vector<64x512xf32>
    tpu.vector_store %arg8[%c0_19, %c0_20], %29 {strides = array<i32>} : memref<64x512xf32, #tpu.memory_space<vmem>>, vector<64x512xf32>,
    return
  }
  func.func @transform_0(%arg0: i32, %arg1: i32) -> (i32, i32) {
    %c0_i32 = arith.constant 0 : i32
    %c0_i32_0 = arith.constant 0 : i32
    return %arg0, %c0_i32 : i32, i32
  }
  func.func @transform_1(%arg0: i32, %arg1: i32) -> (i32, i32) {
    %c0_i32 = arith.constant 0 : i32
    %c0_i32_0 = arith.constant 0 : i32
    return %c0_i32, %arg1 : i32, i32
  }
  func.func @transform_2(%arg0: i32, %arg1: i32) -> (i32, i32) {
    %c0_i32 = arith.constant 0 : i32
    %c0_i32_0 = arith.constant 0 : i32
    %c0_i32_1 = arith.constant 0 : i32
    return %c0_i32, %c0_i32_0 : i32, i32
  }
  func.func @transform_3(%arg0: i32, %arg1: i32) -> (i32, i32) {
    %c0_i32 = arith.constant 0 : i32
    %c0_i32_0 = arith.constant 0 : i32
    %c0_i32_1 = arith.constant 0 : i32
    return %c0_i32, %c0_i32_0 : i32, i32
  }
  func.func @transform_4(%arg0: i32, %arg1: i32) -> (i32, i32) {
    %c0_i32 = arith.constant 0 : i32
    %c0_i32_0 = arith.constant 0 : i32
    %c0_i32_1 = arith.constant 0 : i32
    return %c0_i32, %c0_i32_0 : i32, i32
  }
  func.func @transform_5(%arg0: i32, %arg1: i32) -> (i32, i32) {
    %c0_i32 = arith.constant 0 : i32
    %c0_i32_0 = arith.constant 0 : i32
    %c0_i32_1 = arith.constant 0 : i32
    return %c0_i32, %c0_i32_0 : i32, i32
  }
  func.func @transform_6(%arg0: i32, %arg1: i32) -> (i32, i32) {
    %c0_i32 = arith.constant 0 : i32
    return %arg0, %arg1 : i32, i32
  }
}

</mosaic_0001>

<llo_original>
// kernel: tile.18
$region0: #{tile.18}
  #allocation2 [shape = 's32[1]{0}', space=sflag, size = 0x4, scoped, tag = 'scoped memory for tile.18']
  %s0 = inlined_call_operand.hbm [shape: f32[32], index: 0, kind: input, shape index: {}]
  %s1 = inlined_call_operand.vmem [shape: f32[16,32], index: 1, kind: output, shape index: {}]
  $region1: #{tile.18} parent=0
    #allocation0 [shape = 'u8[512]{0}', space=vmem, size = 0x400, scoped, tag = 'operand span for operand 0']
    #allocation1 [shape = 's32[1]{0}', space=sflag, size = 0x4, scoped, tag = 'scoped memory for tile.18']
    %2 = vsyncpa [#allocation1], 0
    // Predicated region
    $region2: #{tile.18} parent=1 // pred_check
      _
    $region3: #{tile.18} parent=1 // pred_check_branch
      %4 = sbr.rel (0) target = $region5
    $region4: #{tile.18} parent=1 // pred_region
      %s6 = ssub.s32 16, 16
      %7 = vsyncadd [#allocation1], %s6
      %s9 = sshll.u32 [#allocation0], 4
      %s10 = int_to_ptr.vmem [resolvable:$true] %s9
      %12 = dma.hbm_to_vmem [thread:$0]  %s0, 16, %s10, [#allocation1]
    $region5: #{tile.18} parent=1 // pred_fallthru
      _
    // Predicated region
    $region6: #{tile.18} parent=1 // pred_check
      _
    $region7: #{tile.18} parent=1 // pred_check_branch
      %14 = sbr.rel (0) target = $region9
    $region8: #{tile.18} parent=1 // pred_region
      %15 = dma.done [#allocation1], 16
    $region9: #{tile.18} parent=1 // pred_fallthru
      _
    %v16 = vld [vmem:[#allocation0] ss:$0 sm:$0xff]
    %17 = vst [vmem:[%s1] sm:$0xff] %v16
    %s18 = scalar_lea.vmem %s1, 8
    %19 = vst [vmem:[%s18] sm:$0xff] %v16
    %20 = vsyncpa [#allocation1], 1

// kernel: tile.19
$region0: #{tile.19}
  %s0 = inlined_call_operand.vmem [shape: f32[16,32], index: 0, kind: input, shape index: {}]
  %s1 = inlined_call_operand.vmem [shape: f32[1,512], index: 1, kind: output, shape index: {}]
  $region1: #{tile.19} parent=0
    #allocation0 [shape = 'u8[16384]{0}', space=vmem, size = 0x4000, scoped, tag = 'scoped mem for output reshape']
    %v2 = vld [vmem:[%s0] ss:$4 sm:$0xf]
    %vm3 = vcmask 261120
    %4 = vst.msk [vmem:[#allocation0] ss:$8 sm:$0xf] %vm3, %v2
    %s5 = scalar_lea.vmem %s0, 3
    %v6 = vld [vmem:[%s5] ss:$4 sm:$0xf]
    %7 = vrot.lane.b32.xlu0 %v6, 96
    %v8 = vpop.permute.xlu0 %7
    %vm9 = vcmask 1048320
    %10 = vst.msk [vmem:[#allocation0] ss:$8 sm:$0xf] %vm9, %v8
    %s11 = scalar_lea.vmem %s0, 2
    %v12 = vld [vmem:[%s11] ss:$4 sm:$0xf]
    %13 = vrot.lane.b32.xlu0 %v12, 64
    %v14 = vpop.permute.xlu0 %13
    %vm15 = vcmask 785920
    %16 = vst.msk [vmem:[#allocation0] ss:$8 sm:$0xf] %vm15, %v14
    %s17 = scalar_lea.vmem %s0, 1
    %v18 = vld [vmem:[%s17] ss:$4 sm:$0xf]
    %19 = vrot.lane.b32.xlu0 %v18, 32
    %v20 = vpop.permute.xlu0 %19
    %vm21 = vcmask 523520
    %22 = vst.msk [vmem:[#allocation0] ss:$8 sm:$0xf] %vm21, %v20
    %s24 = sshllo.u32 0, 1
    %v26 = vld [vmem:[#allocation0] sm:%s24]
    %s27 = sshllo.u32 0, 1
    %28 = vst [vmem:[%s1] sm:%s27] %v26
    %s29 = scalar_lea.vmem [#allocation0], 8
    %v30 = vld [vmem:[%s29] sm:%s24]
    %s31 = sshllo.u32 0, 1
    %s32 = scalar_lea.vmem %s1, 1
    %33 = vst [vmem:[%s32] sm:%s31] %v30
    %s34 = scalar_lea.vmem [#allocation0], 16
    %v35 = vld [vmem:[%s34] sm:%s24]
    %s36 = sshllo.u32 0, 1
    %s37 = smul.addr 1, 2
    %s38 = scalar_lea.vmem %s1, %s37
    %39 = vst [vmem:[%s38] sm:%s36] %v35
    %s40 = scalar_lea.vmem [#allocation0], 24
    %v41 = vld [vmem:[%s40] sm:%s24]
    %s42 = sshllo.u32 0, 1
    %s43 = smul.addr 1, 3
    %s44 = scalar_lea.vmem %s1, %s43
    %45 = vst [vmem:[%s44] sm:%s42] %v41

// kernel: eq.8
$region0: #{eq.8}
  %s0 = inlined_call_operand.vmem [shape: s32[16,32], index: 0, kind: input, shape index: {}]
  %s1 = inlined_call_operand.vmem [shape: s32[512], index: 1, kind: output, shape index: {}]
  $region1: #{eq.8} parent=0
    #allocation0 [shape = 'u8[4096]{0}', space=vmem, size = 0x1000, scoped, tag = 'scoped mem for output reshape']
    %v2 = vld [vmem:[%s0] ss:$4 sm:$0xf]
    %vm3 = vcmask 261120
    %4 = vst.msk [vmem:[#allocation0] sm:$0xf] %vm3, %v2
    %s5 = scalar_lea.vmem %s0, 3
    %v6 = vld [vmem:[%s5] ss:$4 sm:$0xf]
    %7 = vrot.lane.b32.xlu0 %v6, 96
    %v8 = vpop.permute.xlu0 %7
    %vm9 = vcmask 1048320
    %10 = vst.msk [vmem:[#allocation0] sm:$0xf] %vm9, %v8
    %s11 = scalar_lea.vmem %s0, 2
    %v12 = vld [vmem:[%s11] ss:$4 sm:$0xf]
    %13 = vrot.lane.b32.xlu0 %v12, 64
    %v14 = vpop.permute.xlu0 %13
    %vm15 = vcmask 785920
    %16 = vst.msk [vmem:[#allocation0] sm:$0xf] %vm15, %v14
    %s17 = scalar_lea.vmem %s0, 1
    %v18 = vld [vmem:[%s17] ss:$4 sm:$0xf]
    %19 = vrot.lane.b32.xlu0 %v18, 32
    %v20 = vpop.permute.xlu0 %19
    %vm21 = vcmask 523520
    %22 = vst.msk [vmem:[#allocation0] sm:$0xf] %vm21, %v20
    %s24 = sshllo.u32 0, 4
    %v26 = vld [vmem:[#allocation0] sm:%s24]
    %s27 = sshllo.u32 0, 4
    %28 = vst [vmem:[%s1] sm:%s27] %v26

// kernel: final_patch_expand_x4_forward.1
$region0: #{final_patch_expand_x4_forward.1}
  #allocation0 [shape = 'u32[]', space=smem, size = 0x4, offset = 0x4, fixed_abs, tag = 'smem constant byte address 0x4 - core index']
  #allocation1 [shape = 'u32[144,128]{1,0:T(1,128)}', space=vmem, size = 0x12000, scoped, tag = 'internal scratch']
  %s0 = inlined_call_operand.hbm [shape: f32[512,32], index: 0, kind: input, shape index: {}]
  %s1 = inlined_call_operand.hbm [shape: f32[32,512], index: 1, kind: input, shape index: {}]
  %s2 = inlined_call_operand.vmem [shape: f32[512,16], index: 2, kind: input, shape index: {}]
  %s3 = inlined_call_operand.vmem [shape: f32[16,512], index: 3, kind: input, shape index: {}]
  %s4 = inlined_call_operand.vmem [shape: f32[1,512], index: 4, kind: input, shape index: {}]
  %s5 = inlined_call_operand.vmem [shape: f32[1,512], index: 5, kind: input, shape index: {}]
  %s6 = inlined_call_operand.vmem [shape: f32[512,512], index: 6, kind: output, shape index: {}]
  %s7 = sld [smem:[#allocation0]]
  $region65: #{final_patch_expand_x4_forward.1} parent=0
    _
  %s9 = ssub.s32 1, %s7
  %s10 = scalar_select 0, %s9, %s7
  $region1: #{final_patch_expand_x4_forward.1} parent=0
    #allocation2 [shape = 'u8[65536]{0}', space=vmem, size = 0x10000, scoped, tag = 'input window, operand 0']
    #allocation3 [shape = 's32[2]{0}', space=sflag, size = 0x8, scoped, tag = 'scoped memory for final_patch_expand_x4_forward.1']
    #allocation4 [shape = 'u8[65536]{0}', space=vmem, size = 0x10000, scoped, tag = 'input window, operand 1, single buffered']
    #allocation5 [shape = 's32[1]{0}', space=sflag, size = 0x4, scoped, tag = 'scoped memory for final_patch_expand_x4_forward.1']
    %11 = vsyncpa [#allocation3], 0
    %s12 = scalar_lea.sflag [#allocation3], 1
    %13 = vsyncpa %s12, 0
    %14 = vsyncpa [#allocation5], 0
    loop: start=0, step=1, limit=10
    $region2: #{final_patch_expand_x4_forward.1} parent=1 // loop_pre_header
      _
    $region3: #{final_patch_expand_x4_forward.1} parent=1 // loop_header
      %s16 = sphi 0, %s20
      %p17 = scmp.ge.s32.totalorder %s16, 10
      %s23 = sphi 0, %s35
      %s24 = sphi 0, %s31
      %s25 = sphi 0, %s23
      %s26 = sphi 0, %s24
      %s27 = sphi 0, %s25
      %s28 = sphi 0, %s26
      %s38 = sphi 0, %s40
      %s41 = sphi 0, %s38
      %s42 = sphi 0, %s41
      %s58 = sphi 0, %s42
      %s64 = sphi 0, %s66
      %s67 = sphi 0, %s64
      %s68 = sphi 0, %s67
      %s84 = sphi 0, %s68
      %s88 = sphi 0, %s88
      %s90 = sphi 0, %s88
      %s91 = sphi 0, %s90
      %s105 = sphi 0, %s91
      %s109 = sphi 0, %s109
      %s111 = sphi 0, %s109
      %s112 = sphi 0, %s111
      %s126 = sphi 0, %s112
      %s130 = sphi 0, %s130
      %s132 = sphi 0, %s130
      %s133 = sphi 0, %s132
      %s147 = sphi 0, %s133
      %s151 = sphi 0, %s151
      %s153 = sphi 0, %s151
      %s154 = sphi 0, %s153
      %s168 = sphi 0, %s154
      %s176 = sphi 0, %s178
      %s179 = sphi 0, %s176
      %s180 = sphi 0, %s179
      %s196 = sphi 0, %s180
    $region4: #{final_patch_expand_x4_forward.1} parent=1 // loop_header_branch
      %19 = sbr.rel (%p17) target = $region8
    $region5: #{final_patch_expand_x4_forward.1} parent=1 // loop_body
      %s21 = ssub.s32 %s16, 1
      %s22 = ssub.s32 %s16, 2
      %s29 = sadd.s32 1, %s24
      %p30 = scmp.ge.s32.totalorder %s29, 1
      %s31 = scalar_select %p30, 0, %s29
      %s32 = sadd.s32 1, %s23
      %s33 = scalar_select %p30, %s32, %s23
      %p34 = scmp.ge.s32.totalorder %s33, 8
      %s35 = scalar_select %p34, 0, %s33
      %s36 = ssub.s32 %s23, %s35
      %p37 = scmp.eq.s32.totalorder %s36, 0
      %s39 = sadd.s32 %s38, 1
      %s40 = scalar_select %p37, %s38, %s39
      %p43 = pneg %p37
      %p44 = scmp.eq.s32.totalorder %s16, 7
      %p45 = por %p43, %p44
      %p46 = scmp.ne.s32.totalorder %s38, %s41
      %p47 = scmp.eq.s32.totalorder %s16, 0
      %p48 = por %p46, %p47
      %p49 = scmp.ne.s32.totalorder %s38, %s41
      %p50 = scmp.eq.s32.totalorder %s21, 7
      %p51 = por %p49, %p50
      %p52 = scmp.ne.s32.totalorder %s41, %s42
      %p53 = scmp.eq.s32.totalorder %s21, 0
      %p54 = por %p52, %p53
      %p55 = scmp.ne.s32.totalorder %s41, %s42
      %p56 = scmp.eq.s32.totalorder %s22, 7
      %p57 = por %p55, %p56
      %p59 = scmp.ne.s32.totalorder %s42, %s58
      %p60 = scmp.eq.s32.totalorder %s22, 0
      %p61 = por %p59, %p60
      %s62 = ssub.s32 %s24, %s31
      %p63 = scmp.eq.s32.totalorder %s62, 0
      %s65 = sadd.s32 %s64, 1
      %s66 = scalar_select %p63, %s64, %s65
      %p69 = pneg %p63
      %p70 = scmp.eq.s32.totalorder %s16, 7
      %p71 = por %p69, %p70
      %p72 = scmp.ne.s32.totalorder %s64, %s67
      %p73 = scmp.eq.s32.totalorder %s16, 0
      %p74 = por %p72, %p73
      %p75 = scmp.ne.s32.totalorder %s64, %s67
      %p76 = scmp.eq.s32.totalorder %s21, 7
      %p77 = por %p75, %p76
      %p78 = scmp.ne.s32.totalorder %s67, %s68
      %p79 = scmp.eq.s32.totalorder %s21, 0
      %p80 = por %p78, %p79
      %p81 = scmp.ne.s32.totalorder %s67, %s68
      %p82 = scmp.eq.s32.totalorder %s22, 7
      %p83 = por %p81, %p82
      %p85 = scmp.ne.s32.totalorder %s68, %s84
      %p86 = scmp.eq.s32.totalorder %s22, 0
      %p87 = por %p85, %p86
      %s89 = sadd.s32 %s88, 1
      %p92 = scmp.eq.s32.totalorder %s16, 7
      %p93 = scmp.ne.s32.totalorder %s88, %s90
      %p94 = scmp.eq.s32.totalorder %s16, 0
      %p95 = por %p93, %p94
      %p96 = scmp.ne.s32.totalorder %s88, %s90
      %p97 = scmp.eq.s32.totalorder %s21, 7
      %p98 = por %p96, %p97
      %p99 = scmp.ne.s32.totalorder %s90, %s91
      %p100 = scmp.eq.s32.totalorder %s21, 0
      %p101 = por %p99, %p100
      %p102 = scmp.ne.s32.totalorder %s90, %s91
      %p103 = scmp.eq.s32.totalorder %s22, 7
      %p104 = por %p102, %p103
      %p106 = scmp.ne.s32.totalorder %s91, %s105
      %p107 = scmp.eq.s32.totalorder %s22, 0
      %p108 = por %p106, %p107
      %s110 = sadd.s32 %s109, 1
      %p113 = scmp.eq.s32.totalorder %s16, 7
      %p114 = scmp.ne.s32.totalorder %s109, %s111
      %p115 = scmp.eq.s32.totalorder %s16, 0
      %p116 = por %p114, %p115
      %p117 = scmp.ne.s32.totalorder %s109, %s111
      %p118 = scmp.eq.s32.totalorder %s21, 7
      %p119 = por %p117, %p118
      %p120 = scmp.ne.s32.totalorder %s111, %s112
      %p121 = scmp.eq.s32.totalorder %s21, 0
      %p122 = por %p120, %p121
      %p123 = scmp.ne.s32.totalorder %s111, %s112
      %p124 = scmp.eq.s32.totalorder %s22, 7
      %p125 = por %p123, %p124
      %p127 = scmp.ne.s32.totalorder %s112, %s126
      %p128 = scmp.eq.s32.totalorder %s22, 0
      %p129 = por %p127, %p128
      %s131 = sadd.s32 %s130, 1
      %p134 = scmp.eq.s32.totalorder %s16, 7
      %p135 = scmp.ne.s32.totalorder %s130, %s132
      %p136 = scmp.eq.s32.totalorder %s16, 0
      %p137 = por %p135, %p136
      %p138 = scmp.ne.s32.totalorder %s130, %s132
      %p139 = scmp.eq.s32.totalorder %s21, 7
      %p140 = por %p138, %p139
      %p141 = scmp.ne.s32.totalorder %s132, %s133
      %p142 = scmp.eq.s32.totalorder %s21, 0
      %p143 = por %p141, %p142
      %p144 = scmp.ne.s32.totalorder %s132, %s133
      %p145 = scmp.eq.s32.totalorder %s22, 7
      %p146 = por %p144, %p145
      %p148 = scmp.ne.s32.totalorder %s133, %s147
      %p149 = scmp.eq.s32.totalorder %s22, 0
      %p150 = por %p148, %p149
      %s152 = sadd.s32 %s151, 1
      %p155 = scmp.eq.s32.totalorder %s16, 7
      %p156 = scmp.ne.s32.totalorder %s151, %s153
      %p157 = scmp.eq.s32.totalorder %s16, 0
      %p158 = por %p156, %p157
      %p159 = scmp.ne.s32.totalorder %s151, %s153
      %p160 = scmp.eq.s32.totalorder %s21, 7
      %p161 = por %p159, %p160
      %p162 = scmp.ne.s32.totalorder %s153, %s154
      %p163 = scmp.eq.s32.totalorder %s21, 0
      %p164 = por %p162, %p163
      %p165 = scmp.ne.s32.totalorder %s153, %s154
      %p166 = scmp.eq.s32.totalorder %s22, 7
      %p167 = por %p165, %p166
      %p169 = scmp.ne.s32.totalorder %s154, %s168
      %p170 = scmp.eq.s32.totalorder %s22, 0
      %p171 = por %p169, %p170
      %s172 = ssub.s32 %s23, %s35
      %s173 = ssub.s32 %s24, %s31
      %s174 = sor.u32 %s172, %s173
      %p175 = scmp.eq.s32.totalorder %s174, 0
      %s177 = sadd.s32 %s176, 1
      %s178 = scalar_select %p175, %s176, %s177
      %p181 = pneg %p175
      %p182 = scmp.eq.s32.totalorder %s16, 7
      %p183 = por %p181, %p182
      %p184 = scmp.ne.s32.totalorder %s176, %s179
      %p185 = scmp.eq.s32.totalorder %s16, 0
      %p186 = por %p184, %p185
      %p187 = scmp.ne.s32.totalorder %s176, %s179
      %p188 = scmp.eq.s32.totalorder %s21, 7
      %p189 = por %p187, %p188
      %p190 = scmp.ne.s32.totalorder %s179, %s180
      %p191 = scmp.eq.s32.totalorder %s21, 0
      %p192 = por %p190, %p191
      %p193 = scmp.ne.s32.totalorder %s179, %s180
      %p194 = scmp.eq.s32.totalorder %s22, 7
      %p195 = por %p193, %p194
      %p197 = scmp.ne.s32.totalorder %s180, %s196
      %p198 = scmp.eq.s32.totalorder %s22, 0
      %p199 = por %p197, %p198
      %p200 = scmp.le.s32.totalorder 1, %s16
      %p201 = scmp.lt.s32.totalorder %s16, 9
      %p202 = pnand %p200, %p201
      %p203 = pneg %p202
      // Predicated region
      $region9: #{final_patch_expand_x4_forward.1} parent=5 // pred_check
        _
      $region10: #{final_patch_expand_x4_forward.1} parent=5 // pred_check_branch
        %205 = sbr.rel (%p202) target = $region12
      $region11: #{final_patch_expand_x4_forward.1} parent=5 // pred_region
        %s206 = ssub.s32 %s16, 1
        // Predicated region
        $region13: #{final_patch_expand_x4_forward.1} parent=11 // pred_check
          %p207 = pneg %p80
        $region14: #{final_patch_expand_x4_forward.1} parent=11 // pred_check_branch
          %209 = sbr.rel (%p207) target = $region16
        $region15: #{final_patch_expand_x4_forward.1} parent=11 // pred_region
          %s210 = smul.u32 4, %s26
          %s212 = ssub.s32 2048, 2048
          %213 = vsyncadd [#allocation5], %s212
          %s214 = smul.addr %s210, 128
          %s215 = scalar_lea.hbm %s1, %s214
          %s216 = sshll.u32 [#allocation4], 4
          %s217 = int_to_ptr.vmem [resolvable:$true] %s216
          %222 = dma.hbm_to_vmem [thread:$0]  %s215, 2048, %s217, [#allocation5], 512, 512, 32
        $region16: #{final_patch_expand_x4_forward.1} parent=11 // pred_fallthru
          _
        // Predicated region
        $region17: #{final_patch_expand_x4_forward.1} parent=11 // pred_check
          %p223 = pneg %p101
        $region18: #{final_patch_expand_x4_forward.1} parent=11 // pred_check_branch
          %225 = sbr.rel (%p223) target = $region20
        $region19: #{final_patch_expand_x4_forward.1} parent=11 // pred_region
          _
        $region20: #{final_patch_expand_x4_forward.1} parent=11 // pred_fallthru
          _
        // Predicated region
        $region21: #{final_patch_expand_x4_forward.1} parent=11 // pred_check
          %p226 = pneg %p122
        $region22: #{final_patch_expand_x4_forward.1} parent=11 // pred_check_branch
          %228 = sbr.rel (%p226) target = $region24
        $region23: #{final_patch_expand_x4_forward.1} parent=11 // pred_region
          _
        $region24: #{final_patch_expand_x4_forward.1} parent=11 // pred_fallthru
          _
        // Predicated region
        $region25: #{final_patch_expand_x4_forward.1} parent=11 // pred_check
          %p229 = pneg %p143
        $region26: #{final_patch_expand_x4_forward.1} parent=11 // pred_check_branch
          %231 = sbr.rel (%p229) target = $region28
        $region27: #{final_patch_expand_x4_forward.1} parent=11 // pred_region
          _
        $region28: #{final_patch_expand_x4_forward.1} parent=11 // pred_fallthru
          _
        // Predicated region
        $region29: #{final_patch_expand_x4_forward.1} parent=11 // pred_check
          %p232 = pneg %p164
        $region30: #{final_patch_expand_x4_forward.1} parent=11 // pred_check_branch
          %234 = sbr.rel (%p232) target = $region32
        $region31: #{final_patch_expand_x4_forward.1} parent=11 // pred_region
          _
        $region32: #{final_patch_expand_x4_forward.1} parent=11 // pred_fallthru
          _
      $region12: #{final_patch_expand_x4_forward.1} parent=5 // pred_fallthru
        _
      %p235 = scmp.lt.s32.totalorder %s16, 8
      // Predicated region
      $region33: #{final_patch_expand_x4_forward.1} parent=5 // pred_check
        %p236 = pneg %p235
      $region34: #{final_patch_expand_x4_forward.1} parent=5 // pred_check_branch
        %238 = sbr.rel (%p236) target = $region36
      $region35: #{final_patch_expand_x4_forward.1} parent=5 // pred_region
        // Predicated region
        $region37: #{final_patch_expand_x4_forward.1} parent=35 // pred_check
          %p239 = pneg %p48
        $region38: #{final_patch_expand_x4_forward.1} parent=35 // pred_check_branch
          %241 = sbr.rel (%p239) target = $region40
        $region39: #{final_patch_expand_x4_forward.1} parent=35 // pred_region
          %s242 = sand.u32 %s38, 1
          %s243 = scalar_lea.sflag [#allocation3], %s242
          %s244 = sand.u32 %s38, 1
          %s245 = smul.addr %s244, 64
          %s246 = scalar_lea.vmem [#allocation2], %s245
          %s247 = smul.u32 8, %s23
          %s249 = ssub.s32 1024, 1024
          %250 = vsyncadd %s243, %s249
          %s251 = smul.addr %s247, 128
          %s252 = scalar_lea.hbm %s0, %s251
          %s253 = sshll.u32 %s246, 4
          %s254 = int_to_ptr.vmem [resolvable:$true] %s253
          %259 = dma.hbm_to_vmem [thread:$0]  %s252, 1024, %s254, %s243, 128, 128, 8
        $region40: #{final_patch_expand_x4_forward.1} parent=35 // pred_fallthru
          _
      $region36: #{final_patch_expand_x4_forward.1} parent=5 // pred_fallthru
        _
      %p260 = scmp.le.s32.totalorder 1, %s16
      %p261 = scmp.lt.s32.totalorder %s16, 9
      %p262 = pnand %p260, %p261
      %p263 = pneg %p262
      // Predicated region
      $region41: #{final_patch_expand_x4_forward.1} parent=5 // pred_check
        _
      $region42: #{final_patch_expand_x4_forward.1} parent=5 // pred_check_branch
        %265 = sbr.rel (%p262) target = $region44
      $region43: #{final_patch_expand_x4_forward.1} parent=5 // pred_region
        %s266 = ssub.s32 %s16, 1
        %s267 = sand.u32 %s41, 1
        %s268 = scalar_lea.sflag [#allocation3], %s267
        %s269 = sand.u32 %s41, 1
        %s270 = smul.addr %s269, 64
        %s271 = scalar_lea.vmem [#allocation2], %s270
        // Predicated region
        $region45: #{final_patch_expand_x4_forward.1} parent=43 // pred_check
          %p272 = pneg %p54
        $region46: #{final_patch_expand_x4_forward.1} parent=43 // pred_check_branch
          %274 = sbr.rel (%p272) target = $region48
        $region47: #{final_patch_expand_x4_forward.1} parent=43 // pred_region
          %275 = dma.done %s268, 1024
        $region48: #{final_patch_expand_x4_forward.1} parent=43 // pred_fallthru
          _
        // Predicated region
        $region49: #{final_patch_expand_x4_forward.1} parent=43 // pred_check
          %p276 = pneg %p80
        $region50: #{final_patch_expand_x4_forward.1} parent=43 // pred_check_branch
          %278 = sbr.rel (%p276) target = $region52
        $region51: #{final_patch_expand_x4_forward.1} parent=43 // pred_region
          %279 = dma.done [#allocation5], 2048
        $region52: #{final_patch_expand_x4_forward.1} parent=43 // pred_fallthru
          _
        %s280 = sand.u32 %s41, 1
        %s281 = scalar_lea.sflag [#allocation3], %s280
        %s282 = sand.u32 %s41, 1
        %s283 = smul.addr %s282, 64
        %s284 = scalar_lea.vmem [#allocation2], %s283
        %p285 = pneg %p54
        %p286 = pneg %p51
        %p287 = pneg %p80
        %p288 = pneg %p77
        %p289 = pneg %p101
        %p290 = pneg %p98
        %p291 = pneg %p122
        %p292 = pneg %p119
        %p293 = pneg %p143
        %p294 = pneg %p140
        %p295 = pneg %p164
        %p296 = pneg %p161
        %p297 = pneg %p192
        %p298 = pneg %p189
        %s299 = smul.u32 8, %s25
        %s300 = smul.u32 4, %s26
        %p301 = scmp.lt.s32.totalorder %s299, 63
        %s302 = scalar_select %p301, %s299, 63
        %p303 = scmp.lt.s32.totalorder %s300, 3
        %s304 = scalar_select %p303, %s300, 3
        %s305 = smul.addr %s302, 4
        %s306 = sadd.s32 %s304, %s305
        %s307 = smul.addr %s306, 8
        %s308 = scalar_lea.vmem %s6, %s307
        %s309 = smul.u32 8, %s25
        %s310 = smul.u32 4, %s26
        %s311 = smul.u32 8, %s25
        %s312 = smul.u32 4, %s26
        %p313 = scmp.lt.s32.totalorder %s311, 63
        %s314 = scalar_select %p313, %s311, 63
        %p315 = scmp.lt.s32.totalorder %s312, 3
        %s316 = scalar_select %p315, %s312, 3
        %s317 = smul.addr %s314, 4
        %s318 = sadd.s32 %s316, %s317
        %s319 = smul.addr %s318, 8
        %s320 = scalar_lea.vmem %s6, %s319
        %s321 = smul.u32 8, %s25
        %s322 = smul.u32 4, %s26
        %v323 = vld [vmem:[%s271] sm:$0xff]
        %v324 = vld [vmem:[%s271 + $0x8] sm:$0xff]
        %v325 = vld [vmem:[%s271 + $0x10] sm:$0xff]
        %v326 = vld [vmem:[%s271 + $0x18] sm:$0xff]
        %v327 = vld [vmem:[%s271 + $0x20] sm:$0xff]
        %v328 = vld [vmem:[%s271 + $0x28] sm:$0xff]
        %v329 = vld [vmem:[%s271 + $0x30] sm:$0xff]
        %v330 = vld [vmem:[%s271 + $0x38] sm:$0xff]
        %v331 = vld [vmem:[#allocation4] sm:$0xff]
        %v332 = vld [vmem:[#allocation4 + $0x8] sm:$0xff]
        %v333 = vld [vmem:[#allocation4 + $0x10] sm:$0xff]
        %v334 = vld [vmem:[#allocation4 + $0x18] sm:$0xff]
        %v335 = vld [vmem:[#allocation4 + $0x20] sm:$0xff]
        %v336 = vld [vmem:[#allocation4 + $0x28] sm:$0xff]
        %v337 = vld [vmem:[#allocation4 + $0x30] sm:$0xff]
        %v338 = vld [vmem:[#allocation4 + $0x38] sm:$0xff]
        %v339 = vld [vmem:[#allocation4 + $0x40] sm:$0xff]
        %v340 = vld [vmem:[#allocation4 + $0x48] sm:$0xff]
        %v341 = vld [vmem:[#allocation4 + $0x50] sm:$0xff]
        %v342 = vld [vmem:[#allocation4 + $0x58] sm:$0xff]
        %v343 = vld [vmem:[#allocation4 + $0x60] sm:$0xff]
        %v344 = vld [vmem:[#allocation4 + $0x68] sm:$0xff]
        %v345 = vld [vmem:[#allocation4 + $0x70] sm:$0xff]
        %v346 = vld [vmem:[#allocation4 + $0x78] sm:$0xff]
        %vm347 = vcmask 261120
        %v349 = vsel %vm347, %v323, 0
        %v352 = vsel %vm347, %v324, 0
        %v355 = vsel %vm347, %v325, 0
        %v358 = vsel %vm347, %v326, 0
        %v361 = vsel %vm347, %v327, 0
        %v364 = vsel %vm347, %v328, 0
        %v367 = vsel %vm347, %v329, 0
        %v370 = vsel %vm347, %v330, 0
        %372 = vmatprep.subr.mxu0 %v332
        %373 = vmatpush1.msra.mxu0 %v331
        %374 = vmatprep.subr.mxu0 %v336
        %375 = vmatpush1.msra.mxu0 %v335
        %376 = vmatprep.subr.mxu0 %v340
        %377 = vmatpush1.msra.mxu0 %v339
        %378 = vmatprep.subr.mxu0 %v344
        %379 = vmatpush1.msra.mxu0 %v343
        %380 = vmatprep.subr.mxu0 0.0
        %381 = vmatpush1.msra.mxu0 0.0
        %382 = vmatprep.subr.mxu0 0.0
        %383 = vmatpush1.msra.mxu0 0.0
        %384 = vmatprep.subr.mxu0 0.0
        %385 = vmatpush1.msra.mxu0 0.0
        %386 = vmatprep.subr.mxu0 0.0
        %387 = vmatpush1.msra.mxu0 0.0
        %388 = vmatprep.subr.mxu0 0.0
        %389 = vmatpush1.msra.mxu0 0.0
        %390 = vmatprep.subr.mxu0 0.0
        %391 = vmatpush1.msra.mxu0 0.0
        %392 = vmatprep.subr.mxu0 0.0
        %393 = vmatpush1.msra.mxu0 0.0
        %394 = vmatprep.subr.mxu0 0.0
        %395 = vmatpush1.msra.mxu0 0.0
        %396 = vmatprep.subr.mxu0 0.0
        %397 = vmatpush1.msra.mxu0 0.0
        %398 = vmatprep.subr.mxu0 0.0
        %399 = vmatpush1.msra.mxu0 0.0
        %400 = vmatprep.subr.mxu0 0.0
        %401 = vmatpush1.msra.mxu0 0.0
        %402 = vmatprep.subr.mxu0 0.0
        %403 = vmatpush1.msra.mxu0 0.0
        %404 = vmatprep.subr.mxu0 0.0
        %405 = vmatpush1.msra.mxu0 0.0
        %406 = vmatprep.subr.mxu0 0.0
        %407 = vmatpush1.msra.mxu0 0.0
        %408 = vmatprep.subr.mxu0 0.0
        %409 = vmatpush1.msra.mxu0 0.0
        %410 = vmatprep.subr.mxu0 0.0
        %411 = vmatpush1.msra.mxu0 0.0
        %412 = vmatprep.subr.mxu0 0.0
        %413 = vmatpush1.msra.mxu0 0.0
        %414 = vmatprep.subr.mxu0 0.0
        %415 = vmatpush1.msra.mxu0 0.0
        %416 = vmatprep.subr.mxu0 0.0
        %417 = vmatpush1.msra.mxu0 0.0
        %418 = vmatprep.subr.mxu0 0.0
        %419 = vmatpush1.msra.mxu0 0.0
        %420 = vmatprep.subr.mxu0 0.0
        %421 = vmatpush1.msra.mxu0 0.0
        %422 = vmatprep.subr.mxu0 0.0
        %423 = vmatpush1.msra.mxu0 0.0
        %424 = vmatprep.subr.mxu0 0.0
        %425 = vmatpush1.msra.mxu0 0.0
        %426 = vmatprep.subr.mxu0 0.0
        %427 = vmatpush1.msra.mxu0 0.0
        %428 = vmatprep.subr.mxu0 0.0
        %429 = vmatpush1.msra.mxu0 0.0
        %430 = vmatprep.subr.mxu0 0.0
        %431 = vmatpush1.msra.mxu0 0.0
        %432 = vmatprep.subr.mxu0 0.0
        %433 = vmatpush1.msra.mxu0 0.0
        %434 = vmatprep.subr.mxu0 0.0
        %435 = vmatpush1.msra.mxu0 0.0
        %436 = vmatprep.mubr.f32.mxu0 0.0
        %437 = vmatmul.mubr.f32.gmra.mrb[0].mxu0 %v349
        %v438 = vpop.f32.mrb[0].mxu0
        %v439 = vadd.f32 0.0, %v438
        %v440 = vpop.f32.mrb[0].mxu0
        %v441 = vadd.f32 0.0, %v440
        %442 = vmatprep.mubr.f32.mxu0 0.0
        %443 = vmatmul.mubr.f32.gmra.mrb[0].mxu0 %v352
        %v444 = vpop.f32.mrb[0].mxu0
        %v445 = vadd.f32 0.0, %v444
        %v446 = vpop.f32.mrb[0].mxu0
        %v447 = vadd.f32 0.0, %v446
        %448 = vmatprep.mubr.f32.mxu0 0.0
        %449 = vmatmul.mubr.f32.gmra.mrb[0].mxu0 %v355
        %v450 = vpop.f32.mrb[0].mxu0
        %v451 = vadd.f32 0.0, %v450
        %v452 = vpop.f32.mrb[0].mxu0
        %v453 = vadd.f32 0.0, %v452
        %454 = vmatprep.mubr.f32.mxu0 0.0
        %455 = vmatmul.mubr.f32.gmra.mrb[0].mxu0 %v358
        %v456 = vpop.f32.mrb[0].mxu0
        %v457 = vadd.f32 0.0, %v456
        %v458 = vpop.f32.mrb[0].mxu0
        %v459 = vadd.f32 0.0, %v458
        %460 = vmatprep.mubr.f32.mxu0 0.0
        %461 = vmatmul.mubr.f32.gmra.mrb[0].mxu0 %v361
        %v462 = vpop.f32.mrb[0].mxu0
        %v463 = vadd.f32 0.0, %v462
        %v464 = vpop.f32.mrb[0].mxu0
        %v465 = vadd.f32 0.0, %v464
        %466 = vmatprep.mubr.f32.mxu0 0.0
        %467 = vmatmul.mubr.f32.gmra.mrb[0].mxu0 %v364
        %v468 = vpop.f32.mrb[0].mxu0
        %v469 = vadd.f32 0.0, %v468
        %v470 = vpop.f32.mrb[0].mxu0
        %v471 = vadd.f32 0.0, %v470
        %472 = vmatprep.mubr.f32.mxu0 0.0
        %473 = vmatmul.mubr.f32.gmra.mrb[0].mxu0 %v367
        %v474 = vpop.f32.mrb[0].mxu0
        %v475 = vadd.f32 0.0, %v474
        %v476 = vpop.f32.mrb[0].mxu0
        %v477 = vadd.f32 0.0, %v476
        %478 = vmatprep.mubr.f32.mxu0 0.0
        %479 = vmatmul.mubr.f32.gmra.mrb[0].mxu0 %v370
        %v480 = vpop.f32.mrb[0].mxu0
        %v481 = vadd.f32 0.0, %v480
        %v482 = vpop.f32.mrb[0].mxu0
        %v483 = vadd.f32 0.0, %v482
        %484 = vdwg.mxu0
        %485 = vmatprep.subr.mxu0 %v334
        %486 = vmatpush1.msra.mxu0 %v333
        %487 = vmatprep.subr.mxu0 %v338
        %488 = vmatpush1.msra.mxu0 %v337
        %489 = vmatprep.subr.mxu0 %v342
        %490 = vmatpush1.msra.mxu0 %v341
        %491 = vmatprep.subr.mxu0 %v346
        %492 = vmatpush1.msra.mxu0 %v345
        %493 = vmatprep.subr.mxu0 0.0
        %494 = vmatpush1.msra.mxu0 0.0
        %495 = vmatprep.subr.mxu0 0.0
        %496 = vmatpush1.msra.mxu0 0.0
        %497 = vmatprep.subr.mxu0 0.0
        %498 = vmatpush1.msra.mxu0 0.0
        %499 = vmatprep.subr.mxu0 0.0
        %500 = vmatpush1.msra.mxu0 0.0
        %501 = vmatprep.subr.mxu0 0.0
        %502 = vmatpush1.msra.mxu0 0.0
        %503 = vmatprep.subr.mxu0 0.0
        %504 = vmatpush1.msra.mxu0 0.0
        %505 = vmatprep.subr.mxu0 0.0
        %506 = vmatpush1.msra.mxu0 0.0
        %507 = vmatprep.subr.mxu0 0.0
        %508 = vmatpush1.msra.mxu0 0.0
        %509 = vmatprep.subr.mxu0 0.0
        %510 = vmatpush1.msra.mxu0 0.0
        %511 = vmatprep.subr.mxu0 0.0
        %512 = vmatpush1.msra.mxu0 0.0
        %513 = vmatprep.subr.mxu0 0.0
        %514 = vmatpush1.msra.mxu0 0.0
        %515 = vmatprep.subr.mxu0 0.0
        %516 = vmatpush1.msra.mxu0 0.0
        %517 = vmatprep.subr.mxu0 0.0
        %518 = vmatpush1.msra.mxu0 0.0
        %519 = vmatprep.subr.mxu0 0.0
        %520 = vmatpush1.msra.mxu0 0.0
        %521 = vmatprep.subr.mxu0 0.0
        %522 = vmatpush1.msra.mxu0 0.0
        %523 = vmatprep.subr.mxu0 0.0
        %524 = vmatpush1.msra.mxu0 0.0
        %525 = vmatprep.subr.mxu0 0.0
        %526 = vmatpush1.msra.mxu0 0.0
        %527 = vmatprep.subr.mxu0 0.0
        %528 = vmatpush1.msra.mxu0 0.0
        %529 = vmatprep.subr.mxu0 0.0
        %530 = vmatpush1.msra.mxu0 0.0
        %531 = vmatprep.subr.mxu0 0.0
        %532 = vmatpush1.msra.mxu0 0.0
        %533 = vmatprep.subr.mxu0 0.0
        %534 = vmatpush1.msra.mxu0 0.0
        %535 = vmatprep.subr.mxu0 0.0
        %536 = vmatpush1.msra.mxu0 0.0
        %537 = vmatprep.subr.mxu0 0.0
        %538 = vmatpush1.msra.mxu0 0.0
        %539 = vmatprep.subr.mxu0 0.0
        %540 = vmatpush1.msra.mxu0 0.0
        %541 = vmatprep.subr.mxu0 0.0
        %542 = vmatpush1.msra.mxu0 0.0
        %543 = vmatprep.subr.mxu0 0.0
        %544 = vmatpush1.msra.mxu0 0.0
        %545 = vmatprep.subr.mxu0 0.0
        %546 = vmatpush1.msra.mxu0 0.0
        %547 = vmatprep.subr.mxu0 0.0
        %548 = vmatpush1.msra.mxu0 0.0
        %549 = vmatprep.mubr.f32.mxu0 0.0
        %550 = vmatmul.mubr.f32.gmra.mrb[0].mxu0 %v349
        %v551 = vpop.f32.mrb[0].mxu0
        %v552 = vadd.f32 0.0, %v551
        %v553 = vpop.f32.mrb[0].mxu0
        %v554 = vadd.f32 0.0, %v553
        %555 = vmatprep.mubr.f32.mxu0 0.0
        %556 = vmatmul.mubr.f32.gmra.mrb[0].mxu0 %v352
        %v557 = vpop.f32.mrb[0].mxu0
        %v558 = vadd.f32 0.0, %v557
        %v559 = vpop.f32.mrb[0].mxu0
        %v560 = vadd.f32 0.0, %v559
        %561 = vmatprep.mubr.f32.mxu0 0.0
        %562 = vmatmul.mubr.f32.gmra.mrb[0].mxu0 %v355
        %v563 = vpop.f32.mrb[0].mxu0
        %v564 = vadd.f32 0.0, %v563
        %v565 = vpop.f32.mrb[0].mxu0
        %v566 = vadd.f32 0.0, %v565
        %567 = vmatprep.mubr.f32.mxu0 0.0
        %568 = vmatmul.mubr.f32.gmra.mrb[0].mxu0 %v358
        %v569 = vpop.f32.mrb[0].mxu0
        %v570 = vadd.f32 0.0, %v569
        %v571 = vpop.f32.mrb[0].mxu0
        %v572 = vadd.f32 0.0, %v571
        %573 = vmatprep.mubr.f32.mxu0 0.0
        %574 = vmatmul.mubr.f32.gmra.mrb[0].mxu0 %v361
        %v575 = vpop.f32.mrb[0].mxu0
        %v576 = vadd.f32 0.0, %v575
        %v577 = vpop.f32.mrb[0].mxu0
        %v578 = vadd.f32 0.0, %v577
        %579 = vmatprep.mubr.f32.mxu0 0.0
        %580 = vmatmul.mubr.f32.gmra.mrb[0].mxu0 %v364
        %v581 = vpop.f32.mrb[0].mxu0
        %v582 = vadd.f32 0.0, %v581
        %v583 = vpop.f32.mrb[0].mxu0
        %v584 = vadd.f32 0.0, %v583
        %585 = vmatprep.mubr.f32.mxu0 0.0
        %586 = vmatmul.mubr.f32.gmra.mrb[0].mxu0 %v367
        %v587 = vpop.f32.mrb[0].mxu0
        %v588 = vadd.f32 0.0, %v587
        %v589 = vpop.f32.mrb[0].mxu0
        %v590 = vadd.f32 0.0, %v589
        %591 = vmatprep.mubr.f32.mxu0 0.0
        %592 = vmatmul.mubr.f32.gmra.mrb[0].mxu0 %v370
        %v593 = vpop.f32.mrb[0].mxu0
        %v594 = vadd.f32 0.0, %v593
        %v595 = vpop.f32.mrb[0].mxu0
        %v596 = vadd.f32 0.0, %v595
        %597 = vdwg.mxu0
        %v598 = vld [vmem:[%s2] sm:$0xff]
        %v599 = vld [vmem:[%s2 + $0x8] sm:$0xff]
        %v600 = vld [vmem:[%s2 + $0x10] sm:$0xff]
        %v601 = vld [vmem:[%s2 + $0x18] sm:$0xff]
        %v602 = vld [vmem:[%s2 + $0x20] sm:$0xff]
        %v603 = vld [vmem:[%s2 + $0x28] sm:$0xff]
        %v604 = vld [vmem:[%s2 + $0x30] sm:$0xff]
        %v605 = vld [vmem:[%s2 + $0x38] sm:$0xff]
        %v606 = vld [vmem:[%s2 + $0x40] sm:$0xff]
        %v607 = vld [vmem:[%s2 + $0x48] sm:$0xff]
        %v608 = vld [vmem:[%s2 + $0x50] sm:$0xff]
        %v609 = vld [vmem:[%s2 + $0x58] sm:$0xff]
        %v610 = vld [vmem:[%s2 + $0x60] sm:$0xff]
        %v611 = vld [vmem:[%s2 + $0x68] sm:$0xff]
        %v612 = vld [vmem:[%s2 + $0x70] sm:$0xff]
        %v613 = vld [vmem:[%s2 + $0x78] sm:$0xff]
        %v614 = vld [vmem:[%s2 + $0x80] sm:$0xff]
        %v615 = vld [vmem:[%s2 + $0x88] sm:$0xff]
        %v616 = vld [vmem:[%s2 + $0x90] sm:$0xff]
        %v617 = vld [vmem:[%s2 + $0x98] sm:$0xff]
        %v618 = vld [vmem:[%s2 + $0xa0] sm:$0xff]
        %v619 = vld [vmem:[%s2 + $0xa8] sm:$0xff]
        %v620 = vld [vmem:[%s2 + $0xb0] sm:$0xff]
        %v621 = vld [vmem:[%s2 + $0xb8] sm:$0xff]
        %v622 = vld [vmem:[%s2 + $0xc0] sm:$0xff]
        %v623 = vld [vmem:[%s2 + $0xc8] sm:$0xff]
        %v624 = vld [vmem:[%s2 + $0xd0] sm:$0xff]
        %v625 = vld [vmem:[%s2 + $0xd8] sm:$0xff]
        %v626 = vld [vmem:[%s2 + $0xe0] sm:$0xff]
        %v627 = vld [vmem:[%s2 + $0xe8] sm:$0xff]
        %v628 = vld [vmem:[%s2 + $0xf0] sm:$0xff]
        %v629 = vld [vmem:[%s2 + $0xf8] sm:$0xff]
        %v630 = vld [vmem:[%s2 + $0x100] sm:$0xff]
        %v631 = vld [vmem:[%s2 + $0x108] sm:$0xff]
        %v632 = vld [vmem:[%s2 + $0x110] sm:$0xff]
        %v633 = vld [vmem:[%s2 + $0x118] sm:$0xff]
        %v634 = vld [vmem:[%s2 + $0x120] sm:$0xff]
        %v635 = vld [vmem:[%s2 + $0x128] sm:$0xff]
        %v636 = vld [vmem:[%s2 + $0x130] sm:$0xff]
        %v637 = vld [vmem:[%s2 + $0x138] sm:$0xff]
        %v638 = vld [vmem:[%s2 + $0x140] sm:$0xff]
        %v639 = vld [vmem:[%s2 + $0x148] sm:$0xff]
        %v640 = vld [vmem:[%s2 + $0x150] sm:$0xff]
        %v641 = vld [vmem:[%s2 + $0x158] sm:$0xff]
        %v642 = vld [vmem:[%s2 + $0x160] sm:$0xff]
        %v643 = vld [vmem:[%s2 + $0x168] sm:$0xff]
        %v644 = vld [vmem:[%s2 + $0x170] sm:$0xff]
        %v645 = vld [vmem:[%s2 + $0x178] sm:$0xff]
        %v646 = vld [vmem:[%s2 + $0x180] sm:$0xff]
        %v647 = vld [vmem:[%s2 + $0x188] sm:$0xff]
        %v648 = vld [vmem:[%s2 + $0x190] sm:$0xff]
        %v649 = vld [vmem:[%s2 + $0x198] sm:$0xff]
        %v650 = vld [vmem:[%s2 + $0x1a0] sm:$0xff]
        %v651 = vld [vmem:[%s2 + $0x1a8] sm:$0xff]
        %v652 = vld [vmem:[%s2 + $0x1b0] sm:$0xff]
        %v653 = vld [vmem:[%s2 + $0x1b8] sm:$0xff]
        %v654 = vld [vmem:[%s2 + $0x1c0] sm:$0xff]
        %v655 = vld [vmem:[%s2 + $0x1c8] sm:$0xff]
        %v656 = vld [vmem:[%s2 + $0x1d0] sm:$0xff]
        %v657 = vld [vmem:[%s2 + $0x1d8] sm:$0xff]
        %v658 = vld [vmem:[%s2 + $0x1e0] sm:$0xff]
        %v659 = vld [vmem:[%s2 + $0x1e8] sm:$0xff]
        %v660 = vld [vmem:[%s2 + $0x1f0] sm:$0xff]
        %v661 = vld [vmem:[%s2 + $0x1f8] sm:$0xff]
        %662 = vmatprep.subr.mxu0 0.0
        %663 = vmatpush1.msra.mxu0 %v598
        %664 = vmatprep.subr.mxu0 0.0
        %665 = vmatpush1.msra.mxu0 %v599
        %666 = vmatprep.subr.mxu0 0.0
        %667 = vmatpush1.msra.mxu0 %v600
        %668 = vmatprep.subr.mxu0 0.0
        %669 = vmatpush1.msra.mxu0 %v601
        %670 = vmatprep.subr.mxu0 0.0
        %671 = vmatpush1.msra.mxu0 %v602
        %672 = vmatprep.subr.mxu0 0.0
        %673 = vmatpush1.msra.mxu0 %v603
        %674 = vmatprep.subr.mxu0 0.0
        %675 = vmatpush1.msra.mxu0 %v604
        %676 = vmatprep.subr.mxu0 0.0
        %677 = vmatpush1.msra.mxu0 %v605
        %678 = vmatprep.subr.mxu0 0.0
        %679 = vmatpush1.msra.mxu0 %v606
        %680 = vmatprep.subr.mxu0 0.0
        %681 = vmatpush1.msra.mxu0 %v607
        %682 = vmatprep.subr.mxu0 0.0
        %683 = vmatpush1.msra.mxu0 %v608
        %684 = vmatprep.subr.mxu0 0.0
        %685 = vmatpush1.msra.mxu0 %v609
        %686 = vmatprep.subr.mxu0 0.0
        %687 = vmatpush1.msra.mxu0 %v610
        %688 = vmatprep.subr.mxu0 0.0
        %689 = vmatpush1.msra.mxu0 %v611
        %690 = vmatprep.subr.mxu0 0.0
        %691 = vmatpush1.msra.mxu0 %v612
        %692 = vmatprep.subr.mxu0 0.0
        %693 = vmatpush1.msra.mxu0 %v613
        %694 = vmatprep.subr.mxu0 0.0
        %695 = vmatpush1.msra.mxu0 %v614
        %696 = vmatprep.subr.mxu0 0.0
        %697 = vmatpush1.msra.mxu0 %v615
        %698 = vmatprep.subr.mxu0 0.0
        %699 = vmatpush1.msra.mxu0 %v616
        %700 = vmatprep.subr.mxu0 0.0
        %701 = vmatpush1.msra.mxu0 %v617
        %702 = vmatprep.subr.mxu0 0.0
        %703 = vmatpush1.msra.mxu0 %v618
        %704 = vmatprep.subr.mxu0 0.0
        %705 = vmatpush1.msra.mxu0 %v619
        %706 = vmatprep.subr.mxu0 0.0
        %707 = vmatpush1.msra.mxu0 %v620
        %708 = vmatprep.subr.mxu0 0.0
        %709 = vmatpush1.msra.mxu0 %v621
        %710 = vmatprep.subr.mxu0 0.0
        %711 = vmatpush1.msra.mxu0 %v622
        %712 = vmatprep.subr.mxu0 0.0
        %713 = vmatpush1.msra.mxu0 %v623
        %714 = vmatprep.subr.mxu0 0.0
        %715 = vmatpush1.msra.mxu0 %v624
        %716 = vmatprep.subr.mxu0 0.0
        %717 = vmatpush1.msra.mxu0 %v625
        %718 = vmatprep.subr.mxu0 0.0
        %719 = vmatpush1.msra.mxu0 %v626
        %720 = vmatprep.subr.mxu0 0.0
        %721 = vmatpush1.msra.mxu0 %v627
        %722 = vmatprep.subr.mxu0 0.0
        %723 = vmatpush1.msra.mxu0 %v628
        %724 = vmatprep.subr.mxu0 0.0
        %725 = vmatpush1.msra.mxu0 %v629
        %726 = vmatprep.mubr.f32.mxu0 %v441
        %727 = vmatmul.mubr.f32.gmra.mrb[0].mxu0 %v439
        %v728 = vpop.f32.mrb[0].mxu0
        %v729 = vadd.f32 0.0, %v728
        %v730 = vpop.f32.mrb[0].mxu0
        %731 = vmatprep.mubr.f32.mxu0 %v447
        %732 = vmatmul.mubr.f32.gmra.mrb[0].mxu0 %v445
        %v733 = vpop.f32.mrb[0].mxu0
        %v734 = vadd.f32 0.0, %v733
        %v735 = vpop.f32.mrb[0].mxu0
        %736 = vmatprep.mubr.f32.mxu0 %v453
        %737 = vmatmul.mubr.f32.gmra.mrb[0].mxu0 %v451
        %v738 = vpop.f32.mrb[0].mxu0
        %v739 = vadd.f32 0.0, %v738
        %v740 = vpop.f32.mrb[0].mxu0
        %741 = vmatprep.mubr.f32.mxu0 %v459
        %742 = vmatmul.mubr.f32.gmra.mrb[0].mxu0 %v457
        %v743 = vpop.f32.mrb[0].mxu0
        %v744 = vadd.f32 0.0, %v743
        %v745 = vpop.f32.mrb[0].mxu0
        %746 = vmatprep.mubr.f32.mxu0 %v465
        %747 = vmatmul.mubr.f32.gmra.mrb[0].mxu0 %v463
        %v748 = vpop.f32.mrb[0].mxu0
        %v749 = vadd.f32 0.0, %v748
        %v750 = vpop.f32.mrb[0].mxu0
        %751 = vmatprep.mubr.f32.mxu0 %v471
        %752 = vmatmul.mubr.f32.gmra.mrb[0].mxu0 %v469
        %v753 = vpop.f32.mrb[0].mxu0
        %v754 = vadd.f32 0.0, %v753
        %v755 = vpop.f32.mrb[0].mxu0
        %756 = vmatprep.mubr.f32.mxu0 %v477
        %757 = vmatmul.mubr.f32.gmra.mrb[0].mxu0 %v475
        %v758 = vpop.f32.mrb[0].mxu0
        %v759 = vadd.f32 0.0, %v758
        %v760 = vpop.f32.mrb[0].mxu0
        %761 = vmatprep.mubr.f32.mxu0 %v483
        %762 = vmatmul.mubr.f32.gmra.mrb[0].mxu0 %v481
        %v763 = vpop.f32.mrb[0].mxu0
        %v764 = vadd.f32 0.0, %v763
        %v765 = vpop.f32.mrb[0].mxu0
        %766 = vdwg.mxu0
        %767 = vmatprep.subr.mxu0 0.0
        %768 = vmatpush1.msra.mxu0 %v630
        %769 = vmatprep.subr.mxu0 0.0
        %770 = vmatpush1.msra.mxu0 %v631
        %771 = vmatprep.subr.mxu0 0.0
        %772 = vmatpush1.msra.mxu0 %v632
        %773 = vmatprep.subr.mxu0 0.0
        %774 = vmatpush1.msra.mxu0 %v633
        %775 = vmatprep.subr.mxu0 0.0
        %776 = vmatpush1.msra.mxu0 %v634
        %777 = vmatprep.subr.mxu0 0.0
        %778 = vmatpush1.msra.mxu0 %v635
        %779 = vmatprep.subr.mxu0 0.0
        %780 = vmatpush1.msra.mxu0 %v636
        %781 = vmatprep.subr.mxu0 0.0
        %782 = vmatpush1.msra.mxu0 %v637
        %783 = vmatprep.subr.mxu0 0.0
        %784 = vmatpush1.msra.mxu0 %v638
        %785 = vmatprep.subr.mxu0 0.0
        %786 = vmatpush1.msra.mxu0 %v639
        %787 = vmatprep.subr.mxu0 0.0
        %788 = vmatpush1.msra.mxu0 %v640
        %789 = vmatprep.subr.mxu0 0.0
        %790 = vmatpush1.msra.mxu0 %v641
        %791 = vmatprep.subr.mxu0 0.0
        %792 = vmatpush1.msra.mxu0 %v642
        %793 = vmatprep.subr.mxu0 0.0
        %794 = vmatpush1.msra.mxu0 %v643
        %795 = vmatprep.subr.mxu0 0.0
        %796 = vmatpush1.msra.mxu0 %v644
        %797 = vmatprep.subr.mxu0 0.0
        %798 = vmatpush1.msra.mxu0 %v645
        %799 = vmatprep.subr.mxu0 0.0
        %800 = vmatpush1.msra.mxu0 %v646
        %801 = vmatprep.subr.mxu0 0.0
        %802 = vmatpush1.msra.mxu0 %v647
        %803 = vmatprep.subr.mxu0 0.0
        %804 = vmatpush1.msra.mxu0 %v648
        %805 = vmatprep.subr.mxu0 0.0
        %806 = vmatpush1.msra.mxu0 %v649
        %807 = vmatprep.subr.mxu0 0.0
        %808 = vmatpush1.msra.mxu0 %v650
        %809 = vmatprep.subr.mxu0 0.0
        %810 = vmatpush1.msra.mxu0 %v651
        %811 = vmatprep.subr.mxu0 0.0
        %812 = vmatpush1.msra.mxu0 %v652
        %813 = vmatprep.subr.mxu0 0.0
        %814 = vmatpush1.msra.mxu0 %v653
        %815 = vmatprep.subr.mxu0 0.0
        %816 = vmatpush1.msra.mxu0 %v654
        %817 = vmatprep.subr.mxu0 0.0
        %818 = vmatpush1.msra.mxu0 %v655
        %819 = vmatprep.subr.mxu0 0.0
        %820 = vmatpush1.msra.mxu0 %v656
        %821 = vmatprep.subr.mxu0 0.0
        %822 = vmatpush1.msra.mxu0 %v657
        %823 = vmatprep.subr.mxu0 0.0
        %824 = vmatpush1.msra.mxu0 %v658
        %825 = vmatprep.subr.mxu0 0.0
        %826 = vmatpush1.msra.mxu0 %v659
        %827 = vmatprep.subr.mxu0 0.0
        %828 = vmatpush1.msra.mxu0 %v660
        %829 = vmatprep.subr.mxu0 0.0
        %830 = vmatpush1.msra.mxu0 %v661
        %831 = vmatprep.mubr.f32.mxu0 %v554
        %832 = vmatmul.mubr.f32.gmra.mrb[0].mxu0 %v552
        %v833 = vpop.f32.mrb[0].mxu0
        %v834 = vadd.f32 %v729, %v833
        %v835 = vpop.f32.mrb[0].mxu0
        %836 = vmatprep.mubr.f32.mxu0 %v560
        %837 = vmatmul.mubr.f32.gmra.mrb[0].mxu0 %v558
        %v838 = vpop.f32.mrb[0].mxu0
        %v839 = vadd.f32 %v734, %v838
        %v840 = vpop.f32.mrb[0].mxu0
        %841 = vmatprep.mubr.f32.mxu0 %v566
        %842 = vmatmul.mubr.f32.gmra.mrb[0].mxu0 %v564
        %v843 = vpop.f32.mrb[0].mxu0
        %v844 = vadd.f32 %v739, %v843
        %v845 = vpop.f32.mrb[0].mxu0
        %846 = vmatprep.mubr.f32.mxu0 %v572
        %847 = vmatmul.mubr.f32.gmra.mrb[0].mxu0 %v570
        %v848 = vpop.f32.mrb[0].mxu0
        %v849 = vadd.f32 %v744, %v848
        %v850 = vpop.f32.mrb[0].mxu0
        %851 = vmatprep.mubr.f32.mxu0 %v578
        %852 = vmatmul.mubr.f32.gmra.mrb[0].mxu0 %v576
        %v853 = vpop.f32.mrb[0].mxu0
        %v854 = vadd.f32 %v749, %v853
        %v855 = vpop.f32.mrb[0].mxu0
        %856 = vmatprep.mubr.f32.mxu0 %v584
        %857 = vmatmul.mubr.f32.gmra.mrb[0].mxu0 %v582
        %v858 = vpop.f32.mrb[0].mxu0
        %v859 = vadd.f32 %v754, %v858
        %v860 = vpop.f32.mrb[0].mxu0
        %861 = vmatprep.mubr.f32.mxu0 %v590
        %862 = vmatmul.mubr.f32.gmra.mrb[0].mxu0 %v588
        %v863 = vpop.f32.mrb[0].mxu0
        %v864 = vadd.f32 %v759, %v863
        %v865 = vpop.f32.mrb[0].mxu0
        %866 = vmatprep.mubr.f32.mxu0 %v596
        %867 = vmatmul.mubr.f32.gmra.mrb[0].mxu0 %v594
        %v868 = vpop.f32.mrb[0].mxu0
        %v869 = vadd.f32 %v764, %v868
        %v870 = vpop.f32.mrb[0].mxu0
        %871 = vdwg.mxu0
        %v872 = vmul.f32 %v439, %v439
        %v873 = vmul.f32 %v441, %v441
        %v874 = vmul.f32 %v552, %v552
        %v875 = vmul.f32 %v554, %v554
        %v876 = vmul.f32 %v445, %v445
        %v877 = vmul.f32 %v447, %v447
        %v878 = vmul.f32 %v558, %v558
        %v879 = vmul.f32 %v560, %v560
        %v880 = vmul.f32 %v451, %v451
        %v881 = vmul.f32 %v453, %v453
        %v882 = vmul.f32 %v564, %v564
        %v883 = vmul.f32 %v566, %v566
        %v884 = vmul.f32 %v457, %v457
        %v885 = vmul.f32 %v459, %v459
        %v886 = vmul.f32 %v570, %v570
        %v887 = vmul.f32 %v572, %v572
        %v888 = vmul.f32 %v463, %v463
        %v889 = vmul.f32 %v465, %v465
        %v890 = vmul.f32 %v576, %v576
        %v891 = vmul.f32 %v578, %v578
        %v892 = vmul.f32 %v469, %v469
        %v893 = vmul.f32 %v471, %v471
        %v894 = vmul.f32 %v582, %v582
        %v895 = vmul.f32 %v584, %v584
        %v896 = vmul.f32 %v475, %v475
        %v897 = vmul.f32 %v477, %v477
        %v898 = vmul.f32 %v588, %v588
        %v899 = vmul.f32 %v590, %v590
        %v900 = vmul.f32 %v481, %v481
        %v901 = vmul.f32 %v483, %v483
        %v902 = vmul.f32 %v594, %v594
        %v903 = vmul.f32 %v596, %v596
        %904 = vmatprep.subr.mxu0 0.0
        %905 = vmatpush1.msra.mxu0 %v598
        %906 = vmatprep.subr.mxu0 0.0
        %907 = vmatpush1.msra.mxu0 %v599
        %908 = vmatprep.subr.mxu0 0.0
        %909 = vmatpush1.msra.mxu0 %v600
        %910 = vmatprep.subr.mxu0 0.0
        %911 = vmatpush1.msra.mxu0 %v601
        %912 = vmatprep.subr.mxu0 0.0
        %913 = vmatpush1.msra.mxu0 %v602
        %914 = vmatprep.subr.mxu0 0.0
        %915 = vmatpush1.msra.mxu0 %v603
        %916 = vmatprep.subr.mxu0 0.0
        %917 = vmatpush1.msra.mxu0 %v604
        %918 = vmatprep.subr.mxu0 0.0
        %919 = vmatpush1.msra.mxu0 %v605
        %920 = vmatprep.subr.mxu0 0.0
        %921 = vmatpush1.msra.mxu0 %v606
        %922 = vmatprep.subr.mxu0 0.0
        %923 = vmatpush1.msra.mxu0 %v607
        %924 = vmatprep.subr.mxu0 0.0
        %925 = vmatpush1.msra.mxu0 %v608
        %926 = vmatprep.subr.mxu0 0.0
        %927 = vmatpush1.msra.mxu0 %v609
        %928 = vmatprep.subr.mxu0 0.0
        %929 = vmatpush1.msra.mxu0 %v610
        %930 = vmatprep.subr.mxu0 0.0
        %931 = vmatpush1.msra.mxu0 %v611
        %932 = vmatprep.subr.mxu0 0.0
        %933 = vmatpush1.msra.mxu0 %v612
        %934 = vmatprep.subr.mxu0 0.0
        %935 = vmatpush1.msra.mxu0 %v613
        %936 = vmatprep.subr.mxu0 0.0
        %937 = vmatpush1.msra.mxu0 %v614
        %938 = vmatprep.subr.mxu0 0.0
        %939 = vmatpush1.msra.mxu0 %v615
        %940 = vmatprep.subr.mxu0 0.0
        %941 = vmatpush1.msra.mxu0 %v616
        %942 = vmatprep.subr.mxu0 0.0
        %943 = vmatpush1.msra.mxu0 %v617
        %944 = vmatprep.subr.mxu0 0.0
        %945 = vmatpush1.msra.mxu0 %v618
        %946 = vmatprep.subr.mxu0 0.0
        %947 = vmatpush1.msra.mxu0 %v619
        %948 = vmatprep.subr.mxu0 0.0
        %949 = vmatpush1.msra.mxu0 %v620
        %950 = vmatprep.subr.mxu0 0.0
        %951 = vmatpush1.msra.mxu0 %v621
        %952 = vmatprep.subr.mxu0 0.0
        %953 = vmatpush1.msra.mxu0 %v622
        %954 = vmatprep.subr.mxu0 0.0
        %955 = vmatpush1.msra.mxu0 %v623
        %956 = vmatprep.subr.mxu0 0.0
        %957 = vmatpush1.msra.mxu0 %v624
        %958 = vmatprep.subr.mxu0 0.0
        %959 = vmatpush1.msra.mxu0 %v625
        %960 = vmatprep.subr.mxu0 0.0
        %961 = vmatpush1.msra.mxu0 %v626
        %962 = vmatprep.subr.mxu0 0.0
        %963 = vmatpush1.msra.mxu0 %v627
        %964 = vmatprep.subr.mxu0 0.0
        %965 = vmatpush1.msra.mxu0 %v628
        %966 = vmatprep.subr.mxu0 0.0
        %967 = vmatpush1.msra.mxu0 %v629
        %968 = vmatprep.mubr.f32.mxu0 %v873
        %969 = vmatmul.mubr.f32.gmra.mrb[0].mxu0 %v872
        %v970 = vpop.f32.mrb[0].mxu0
        %v971 = vadd.f32 0.0, %v970
        %v972 = vpop.f32.mrb[0].mxu0
        %973 = vmatprep.mubr.f32.mxu0 %v877
        %974 = vmatmul.mubr.f32.gmra.mrb[0].mxu0 %v876
        %v975 = vpop.f32.mrb[0].mxu0
        %v976 = vadd.f32 0.0, %v975
        %v977 = vpop.f32.mrb[0].mxu0
        %978 = vmatprep.mubr.f32.mxu0 %v881
        %979 = vmatmul.mubr.f32.gmra.mrb[0].mxu0 %v880
        %v980 = vpop.f32.mrb[0].mxu0
        %v981 = vadd.f32 0.0, %v980
        %v982 = vpop.f32.mrb[0].mxu0
        %983 = vmatprep.mubr.f32.mxu0 %v885
        %984 = vmatmul.mubr.f32.gmra.mrb[0].mxu0 %v884
        %v985 = vpop.f32.mrb[0].mxu0
        %v986 = vadd.f32 0.0, %v985
        %v987 = vpop.f32.mrb[0].mxu0
        %988 = vmatprep.mubr.f32.mxu0 %v889
        %989 = vmatmul.mubr.f32.gmra.mrb[0].mxu0 %v888
        %v990 = vpop.f32.mrb[0].mxu0
        %v991 = vadd.f32 0.0, %v990
        %v992 = vpop.f32.mrb[0].mxu0
        %993 = vmatprep.mubr.f32.mxu0 %v893
        %994 = vmatmul.mubr.f32.gmra.mrb[0].mxu0 %v892
        %v995 = vpop.f32.mrb[0].mxu0
        %v996 = vadd.f32 0.0, %v995
        %v997 = vpop.f32.mrb[0].mxu0
        %998 = vmatprep.mubr.f32.mxu0 %v897
        %999 = vmatmul.mubr.f32.gmra.mrb[0].mxu0 %v896
        %v1000 = vpop.f32.mrb[0].mxu0
        %v1001 = vadd.f32 0.0, %v1000
        %v1002 = vpop.f32.mrb[0].mxu0
        %1003 = vmatprep.mubr.f32.mxu0 %v901
        %1004 = vmatmul.mubr.f32.gmra.mrb[0].mxu0 %v900
        %v1005 = vpop.f32.mrb[0].mxu0
        %v1006 = vadd.f32 0.0, %v1005
        %v1007 = vpop.f32.mrb[0].mxu0
        %1008 = vdwg.mxu0
        %1009 = vmatprep.subr.mxu0 0.0
        %1010 = vmatpush1.msra.mxu0 %v630
        %1011 = vmatprep.subr.mxu0 0.0
        %1012 = vmatpush1.msra.mxu0 %v631
        %1013 = vmatprep.subr.mxu0 0.0
        %1014 = vmatpush1.msra.mxu0 %v632
        %1015 = vmatprep.subr.mxu0 0.0
        %1016 = vmatpush1.msra.mxu0 %v633
        %1017 = vmatprep.subr.mxu0 0.0
        %1018 = vmatpush1.msra.mxu0 %v634
        %1019 = vmatprep.subr.mxu0 0.0
        %1020 = vmatpush1.msra.mxu0 %v635
        %1021 = vmatprep.subr.mxu0 0.0
        %1022 = vmatpush1.msra.mxu0 %v636
        %1023 = vmatprep.subr.mxu0 0.0
        %1024 = vmatpush1.msra.mxu0 %v637
        %1025 = vmatprep.subr.mxu0 0.0
        %1026 = vmatpush1.msra.mxu0 %v638
        %1027 = vmatprep.subr.mxu0 0.0
        %1028 = vmatpush1.msra.mxu0 %v639
        %1029 = vmatprep.subr.mxu0 0.0
        %1030 = vmatpush1.msra.mxu0 %v640
        %1031 = vmatprep.subr.mxu0 0.0
        %1032 = vmatpush1.msra.mxu0 %v641
        %1033 = vmatprep.subr.mxu0 0.0
        %1034 = vmatpush1.msra.mxu0 %v642
        %1035 = vmatprep.subr.mxu0 0.0
        %1036 = vmatpush1.msra.mxu0 %v643
        %1037 = vmatprep.subr.mxu0 0.0
        %1038 = vmatpush1.msra.mxu0 %v644
        %1039 = vmatprep.subr.mxu0 0.0
        %1040 = vmatpush1.msra.mxu0 %v645
        %1041 = vmatprep.subr.mxu0 0.0
        %1042 = vmatpush1.msra.mxu0 %v646
        %1043 = vmatprep.subr.mxu0 0.0
        %1044 = vmatpush1.msra.mxu0 %v647
        %1045 = vmatprep.subr.mxu0 0.0
        %1046 = vmatpush1.msra.mxu0 %v648
        %1047 = vmatprep.subr.mxu0 0.0
        %1048 = vmatpush1.msra.mxu0 %v649
        %1049 = vmatprep.subr.mxu0 0.0
        %1050 = vmatpush1.msra.mxu0 %v650
        %1051 = vmatprep.subr.mxu0 0.0
        %1052 = vmatpush1.msra.mxu0 %v651
        %1053 = vmatprep.subr.mxu0 0.0
        %1054 = vmatpush1.msra.mxu0 %v652
        %1055 = vmatprep.subr.mxu0 0.0
        %1056 = vmatpush1.msra.mxu0 %v653
        %1057 = vmatprep.subr.mxu0 0.0
        %1058 = vmatpush1.msra.mxu0 %v654
        %1059 = vmatprep.subr.mxu0 0.0
        %1060 = vmatpush1.msra.mxu0 %v655
        %1061 = vmatprep.subr.mxu0 0.0
        %1062 = vmatpush1.msra.mxu0 %v656
        %1063 = vmatprep.subr.mxu0 0.0
        %1064 = vmatpush1.msra.mxu0 %v657
        %1065 = vmatprep.subr.mxu0 0.0
        %1066 = vmatpush1.msra.mxu0 %v658
        %1067 = vmatprep.subr.mxu0 0.0
        %1068 = vmatpush1.msra.mxu0 %v659
        %1069 = vmatprep.subr.mxu0 0.0
        %1070 = vmatpush1.msra.mxu0 %v660
        %1071 = vmatprep.subr.mxu0 0.0
        %1072 = vmatpush1.msra.mxu0 %v661
        %1073 = vmatprep.mubr.f32.mxu0 %v875
        %1074 = vmatmul.mubr.f32.gmra.mrb[0].mxu0 %v874
        %v1075 = vpop.f32.mrb[0].mxu0
        %v1076 = vadd.f32 %v971, %v1075
        %v1077 = vpop.f32.mrb[0].mxu0
        %1078 = vmatprep.mubr.f32.mxu0 %v879
        %1079 = vmatmul.mubr.f32.gmra.mrb[0].mxu0 %v878
        %v1080 = vpop.f32.mrb[0].mxu0
        %v1081 = vadd.f32 %v976, %v1080
        %v1082 = vpop.f32.mrb[0].mxu0
        %1083 = vmatprep.mubr.f32.mxu0 %v883
        %1084 = vmatmul.mubr.f32.gmra.mrb[0].mxu0 %v882
        %v1085 = vpop.f32.mrb[0].mxu0
        %v1086 = vadd.f32 %v981, %v1085
        %v1087 = vpop.f32.mrb[0].mxu0
        %1088 = vmatprep.mubr.f32.mxu0 %v887
        %1089 = vmatmul.mubr.f32.gmra.mrb[0].mxu0 %v886
        %v1090 = vpop.f32.mrb[0].mxu0
        %v1091 = vadd.f32 %v986, %v1090
        %v1092 = vpop.f32.mrb[0].mxu0
        %1093 = vmatprep.mubr.f32.mxu0 %v891
        %1094 = vmatmul.mubr.f32.gmra.mrb[0].mxu0 %v890
        %v1095 = vpop.f32.mrb[0].mxu0
        %v1096 = vadd.f32 %v991, %v1095
        %v1097 = vpop.f32.mrb[0].mxu0
        %1098 = vmatprep.mubr.f32.mxu0 %v895
        %1099 = vmatmul.mubr.f32.gmra.mrb[0].mxu0 %v894
        %v1100 = vpop.f32.mrb[0].mxu0
        %v1101 = vadd.f32 %v996, %v1100
        %v1102 = vpop.f32.mrb[0].mxu0
        %1103 = vmatprep.mubr.f32.mxu0 %v899
        %1104 = vmatmul.mubr.f32.gmra.mrb[0].mxu0 %v898
        %v1105 = vpop.f32.mrb[0].mxu0
        %v1106 = vadd.f32 %v1001, %v1105
        %v1107 = vpop.f32.mrb[0].mxu0
        %1108 = vmatprep.mubr.f32.mxu0 %v903
        %1109 = vmatmul.mubr.f32.gmra.mrb[0].mxu0 %v902
        %v1110 = vpop.f32.mrb[0].mxu0
        %v1111 = vadd.f32 %v1006, %v1110
        %v1112 = vpop.f32.mrb[0].mxu0
        %1113 = vdwg.mxu0
        %v1114 = vmul.f32 %v834, 0.03125
        %v1115 = vmul.f32 %v839, 0.03125
        %v1116 = vmul.f32 %v844, 0.03125
        %v1117 = vmul.f32 %v849, 0.03125
        %v1118 = vmul.f32 %v854, 0.03125
        %v1119 = vmul.f32 %v859, 0.03125
        %v1120 = vmul.f32 %v864, 0.03125
        %v1121 = vmul.f32 %v869, 0.03125
        %v1122 = vmul.f32 %v1076, 0.03125
        %v1123 = vmul.f32 %v1081, 0.03125
        %v1124 = vmul.f32 %v1086, 0.03125
        %v1125 = vmul.f32 %v1091, 0.03125
        %v1126 = vmul.f32 %v1096, 0.03125
        %v1127 = vmul.f32 %v1101, 0.03125
        %v1128 = vmul.f32 %v1106, 0.03125
        %v1129 = vmul.f32 %v1111, 0.03125
        %v1130 = vmul.f32 %v1114, %v1114
        %v1131 = vmul.f32 %v1115, %v1115
        %v1132 = vmul.f32 %v1116, %v1116
        %v1133 = vmul.f32 %v1117, %v1117
        %v1134 = vmul.f32 %v1118, %v1118
        %v1135 = vmul.f32 %v1119, %v1119
        %v1136 = vmul.f32 %v1120, %v1120
        %v1137 = vmul.f32 %v1121, %v1121
        %v1138 = vsub.f32 %v1122, %v1130
        %v1139 = vsub.f32 %v1123, %v1131
        %v1140 = vsub.f32 %v1124, %v1132
        %v1141 = vsub.f32 %v1125, %v1133
        %v1142 = vsub.f32 %v1126, %v1134
        %v1143 = vsub.f32 %v1127, %v1135
        %v1144 = vsub.f32 %v1128, %v1136
        %v1145 = vsub.f32 %v1129, %v1137
        %v1146 = vmax.f32 %v1138, 0.0
        %v1147 = vmax.f32 %v1139, 0.0
        %v1148 = vmax.f32 %v1140, 0.0
        %v1149 = vmax.f32 %v1141, 0.0
        %v1150 = vmax.f32 %v1142, 0.0
        %v1151 = vmax.f32 %v1143, 0.0
        %v1152 = vmax.f32 %v1144, 0.0
        %v1153 = vmax.f32 %v1145, 0.0
        %v1154 = vadd.f32 %v1146, 1e-05
        %v1155 = vadd.f32 %v1147, 1e-05
        %v1156 = vadd.f32 %v1148, 1e-05
        %v1157 = vadd.f32 %v1149, 1e-05
        %v1158 = vadd.f32 %v1150, 1e-05
        %v1159 = vadd.f32 %v1151, 1e-05
        %v1160 = vadd.f32 %v1152, 1e-05
        %v1161 = vadd.f32 %v1153, 1e-05
        %v1162 = vrsqrt.pop %v1154
        %v1163 = vrsqrt.pop %v1155
        %v1164 = vrsqrt.pop %v1156
        %v1165 = vrsqrt.pop %v1157
        %v1166 = vrsqrt.pop %v1158
        %v1167 = vrsqrt.pop %v1159
        %v1168 = vrsqrt.pop %v1160
        %v1169 = vrsqrt.pop %v1161
        %v1170 = vld [vmem:[%s3] sm:$0xff]
        %v1171 = vld [vmem:[%s3 + $0x8] sm:$0xff]
        %v1172 = vld [vmem:[%s3 + $0x10] sm:$0xff]
        %v1173 = vld [vmem:[%s3 + $0x18] sm:$0xff]
        %v1174 = vld [vmem:[%s3 + $0x20] sm:$0xff]
        %v1175 = vld [vmem:[%s3 + $0x28] sm:$0xff]
        %v1176 = vld [vmem:[%s3 + $0x30] sm:$0xff]
        %v1177 = vld [vmem:[%s3 + $0x38] sm:$0xff]
        %vm1178 = vcmask 130048
        %v1180 = vsel %vm1178, %v1162, 0
        %v1183 = vsel %vm1178, %v1163, 0
        %v1186 = vsel %vm1178, %v1164, 0
        %v1189 = vsel %vm1178, %v1165, 0
        %v1192 = vsel %vm1178, %v1166, 0
        %v1195 = vsel %vm1178, %v1167, 0
        %v1198 = vsel %vm1178, %v1168, 0
        %v1201 = vsel %vm1178, %v1169, 0
        %1203 = vmatprep.subr.mxu0 %v1171
        %1204 = vmatpush1.msra.mxu0 %v1170
        %1205 = vmatprep.subr.mxu0 %v1175
        %1206 = vmatpush1.msra.mxu0 %v1174
        %1207 = vmatprep.subr.mxu0 0.0
        %1208 = vmatpush1.msra.mxu0 0.0
        %1209 = vmatprep.subr.mxu0 0.0
        %1210 = vmatpush1.msra.mxu0 0.0
        %1211 = vmatprep.subr.mxu0 0.0
        %1212 = vmatpush1.msra.mxu0 0.0
        %1213 = vmatprep.subr.mxu0 0.0
        %1214 = vmatpush1.msra.mxu0 0.0
        %1215 = vmatprep.subr.mxu0 0.0
        %1216 = vmatpush1.msra.mxu0 0.0
        %1217 = vmatprep.subr.mxu0 0.0
        %1218 = vmatpush1.msra.mxu0 0.0
        %1219 = vmatprep.subr.mxu0 0.0
        %1220 = vmatpush1.msra.mxu0 0.0
        %1221 = vmatprep.subr.mxu0 0.0
        %1222 = vmatpush1.msra.mxu0 0.0
        %1223 = vmatprep.subr.mxu0 0.0
        %1224 = vmatpush1.msra.mxu0 0.0
        %1225 = vmatprep.subr.mxu0 0.0
        %1226 = vmatpush1.msra.mxu0 0.0
        %1227 = vmatprep.subr.mxu0 0.0
        %1228 = vmatpush1.msra.mxu0 0.0
        %1229 = vmatprep.subr.mxu0 0.0
        %1230 = vmatpush1.msra.mxu0 0.0
        %1231 = vmatprep.subr.mxu0 0.0
        %1232 = vmatpush1.msra.mxu0 0.0
        %1233 = vmatprep.subr.mxu0 0.0
        %1234 = vmatpush1.msra.mxu0 0.0
        %1235 = vmatprep.subr.mxu0 0.0
        %1236 = vmatpush1.msra.mxu0 0.0
        %1237 = vmatprep.subr.mxu0 0.0
        %1238 = vmatpush1.msra.mxu0 0.0
        %1239 = vmatprep.subr.mxu0 0.0
        %1240 = vmatpush1.msra.mxu0 0.0
        %1241 = vmatprep.subr.mxu0 0.0
        %1242 = vmatpush1.msra.mxu0 0.0
        %1243 = vmatprep.subr.mxu0 0.0
        %1244 = vmatpush1.msra.mxu0 0.0
        %1245 = vmatprep.subr.mxu0 0.0
        %1246 = vmatpush1.msra.mxu0 0.0
        %1247 = vmatprep.subr.mxu0 0.0
        %1248 = vmatpush1.msra.mxu0 0.0
        %1249 = vmatprep.subr.mxu0 0.0
        %1250 = vmatpush1.msra.mxu0 0.0
        %1251 = vmatprep.subr.mxu0 0.0
        %1252 = vmatpush1.msra.mxu0 0.0
        %1253 = vmatprep.subr.mxu0 0.0
        %1254 = vmatpush1.msra.mxu0 0.0
        %1255 = vmatprep.subr.mxu0 0.0
        %1256 = vmatpush1.msra.mxu0 0.0
        %1257 = vmatprep.subr.mxu0 0.0
        %1258 = vmatpush1.msra.mxu0 0.0
        %1259 = vmatprep.subr.mxu0 0.0
        %1260 = vmatpush1.msra.mxu0 0.0
        %1261 = vmatprep.subr.mxu0 0.0
        %1262 = vmatpush1.msra.mxu0 0.0
        %1263 = vmatprep.subr.mxu0 0.0
        %1264 = vmatpush1.msra.mxu0 0.0
        %1265 = vmatprep.subr.mxu0 0.0
        %1266 = vmatpush1.msra.mxu0 0.0
        %1267 = vmatprep.mubr.f32.mxu0 0.0
        %1268 = vmatmul.mubr.f32.gmra.mrb[0].mxu0 %v1180
        %v1269 = vpop.f32.mrb[0].mxu0
        %v1270 = vadd.f32 0.0, %v1269
        %v1271 = vpop.f32.mrb[0].mxu0
        %v1272 = vadd.f32 0.0, %v1271
        %1273 = vmatprep.mubr.f32.mxu0 0.0
        %1274 = vmatmul.mubr.f32.gmra.mrb[0].mxu0 %v1183
        %v1275 = vpop.f32.mrb[0].mxu0
        %v1276 = vadd.f32 0.0, %v1275
        %v1277 = vpop.f32.mrb[0].mxu0
        %v1278 = vadd.f32 0.0, %v1277
        %1279 = vmatprep.mubr.f32.mxu0 0.0
        %1280 = vmatmul.mubr.f32.gmra.mrb[0].mxu0 %v1186
        %v1281 = vpop.f32.mrb[0].mxu0
        %v1282 = vadd.f32 0.0, %v1281
        %v1283 = vpop.f32.mrb[0].mxu0
        %v1284 = vadd.f32 0.0, %v1283
        %1285 = vmatprep.mubr.f32.mxu0 0.0
        %1286 = vmatmul.mubr.f32.gmra.mrb[0].mxu0 %v1189
        %v1287 = vpop.f32.mrb[0].mxu0
        %v1288 = vadd.f32 0.0, %v1287
        %v1289 = vpop.f32.mrb[0].mxu0
        %v1290 = vadd.f32 0.0, %v1289
        %1291 = vmatprep.mubr.f32.mxu0 0.0
        %1292 = vmatmul.mubr.f32.gmra.mrb[0].mxu0 %v1192
        %v1293 = vpop.f32.mrb[0].mxu0
        %v1294 = vadd.f32 0.0, %v1293
        %v1295 = vpop.f32.mrb[0].mxu0
        %v1296 = vadd.f32 0.0, %v1295
        %1297 = vmatprep.mubr.f32.mxu0 0.0
        %1298 = vmatmul.mubr.f32.gmra.mrb[0].mxu0 %v1195
        %v1299 = vpop.f32.mrb[0].mxu0
        %v1300 = vadd.f32 0.0, %v1299
        %v1301 = vpop.f32.mrb[0].mxu0
        %v1302 = vadd.f32 0.0, %v1301
        %1303 = vmatprep.mubr.f32.mxu0 0.0
        %1304 = vmatmul.mubr.f32.gmra.mrb[0].mxu0 %v1198
        %v1305 = vpop.f32.mrb[0].mxu0
        %v1306 = vadd.f32 0.0, %v1305
        %v1307 = vpop.f32.mrb[0].mxu0
        %v1308 = vadd.f32 0.0, %v1307
        %1309 = vmatprep.mubr.f32.mxu0 0.0
        %1310 = vmatmul.mubr.f32.gmra.mrb[0].mxu0 %v1201
        %v1311 = vpop.f32.mrb[0].mxu0
        %v1312 = vadd.f32 0.0, %v1311
        %v1313 = vpop.f32.mrb[0].mxu0
        %v1314 = vadd.f32 0.0, %v1313
        %1315 = vdwg.mxu0
        %1316 = vmatprep.subr.mxu0 %v1173
        %1317 = vmatpush1.msra.mxu0 %v1172
        %1318 = vmatprep.subr.mxu0 %v1177
        %1319 = vmatpush1.msra.mxu0 %v1176
        %1320 = vmatprep.subr.mxu0 0.0
        %1321 = vmatpush1.msra.mxu0 0.0
        %1322 = vmatprep.subr.mxu0 0.0
        %1323 = vmatpush1.msra.mxu0 0.0
        %1324 = vmatprep.subr.mxu0 0.0
        %1325 = vmatpush1.msra.mxu0 0.0
        %1326 = vmatprep.subr.mxu0 0.0
        %1327 = vmatpush1.msra.mxu0 0.0
        %1328 = vmatprep.subr.mxu0 0.0
        %1329 = vmatpush1.msra.mxu0 0.0
        %1330 = vmatprep.subr.mxu0 0.0
        %1331 = vmatpush1.msra.mxu0 0.0
        %1332 = vmatprep.subr.mxu0 0.0
        %1333 = vmatpush1.msra.mxu0 0.0
        %1334 = vmatprep.subr.mxu0 0.0
        %1335 = vmatpush1.msra.mxu0 0.0
        %1336 = vmatprep.subr.mxu0 0.0
        %1337 = vmatpush1.msra.mxu0 0.0
        %1338 = vmatprep.subr.mxu0 0.0
        %1339 = vmatpush1.msra.mxu0 0.0
        %1340 = vmatprep.subr.mxu0 0.0
        %1341 = vmatpush1.msra.mxu0 0.0
        %1342 = vmatprep.subr.mxu0 0.0
        %1343 = vmatpush1.msra.mxu0 0.0
        %1344 = vmatprep.subr.mxu0 0.0
        %1345 = vmatpush1.msra.mxu0 0.0
        %1346 = vmatprep.subr.mxu0 0.0
        %1347 = vmatpush1.msra.mxu0 0.0
        %1348 = vmatprep.subr.mxu0 0.0
        %1349 = vmatpush1.msra.mxu0 0.0
        %1350 = vmatprep.subr.mxu0 0.0
        %1351 = vmatpush1.msra.mxu0 0.0
        %1352 = vmatprep.subr.mxu0 0.0
        %1353 = vmatpush1.msra.mxu0 0.0
        %1354 = vmatprep.subr.mxu0 0.0
        %1355 = vmatpush1.msra.mxu0 0.0
        %1356 = vmatprep.subr.mxu0 0.0
        %1357 = vmatpush1.msra.mxu0 0.0
        %1358 = vmatprep.subr.mxu0 0.0
        %1359 = vmatpush1.msra.mxu0 0.0
        %1360 = vmatprep.subr.mxu0 0.0
        %1361 = vmatpush1.msra.mxu0 0.0
        %1362 = vmatprep.subr.mxu0 0.0
        %1363 = vmatpush1.msra.mxu0 0.0
        %1364 = vmatprep.subr.mxu0 0.0
        %1365 = vmatpush1.msra.mxu0 0.0
        %1366 = vmatprep.subr.mxu0 0.0
        %1367 = vmatpush1.msra.mxu0 0.0
        %1368 = vmatprep.subr.mxu0 0.0
        %1369 = vmatpush1.msra.mxu0 0.0
        %1370 = vmatprep.subr.mxu0 0.0
        %1371 = vmatpush1.msra.mxu0 0.0
        %1372 = vmatprep.subr.mxu0 0.0
        %1373 = vmatpush1.msra.mxu0 0.0
        %1374 = vmatprep.subr.mxu0 0.0
        %1375 = vmatpush1.msra.mxu0 0.0
        %1376 = vmatprep.subr.mxu0 0.0
        %1377 = vmatpush1.msra.mxu0 0.0
        %1378 = vmatprep.subr.mxu0 0.0
        %1379 = vmatpush1.msra.mxu0 0.0
        %1380 = vmatprep.mubr.f32.mxu0 0.0
        %1381 = vmatmul.mubr.f32.gmra.mrb[0].mxu0 %v1180
        %v1382 = vpop.f32.mrb[0].mxu0
        %v1383 = vadd.f32 0.0, %v1382
        %v1384 = vpop.f32.mrb[0].mxu0
        %v1385 = vadd.f32 0.0, %v1384
        %1386 = vmatprep.mubr.f32.mxu0 0.0
        %1387 = vmatmul.mubr.f32.gmra.mrb[0].mxu0 %v1183
        %v1388 = vpop.f32.mrb[0].mxu0
        %v1389 = vadd.f32 0.0, %v1388
        %v1390 = vpop.f32.mrb[0].mxu0
        %v1391 = vadd.f32 0.0, %v1390
        %1392 = vmatprep.mubr.f32.mxu0 0.0
        %1393 = vmatmul.mubr.f32.gmra.mrb[0].mxu0 %v1186
        %v1394 = vpop.f32.mrb[0].mxu0
        %v1395 = vadd.f32 0.0, %v1394
        %v1396 = vpop.f32.mrb[0].mxu0
        %v1397 = vadd.f32 0.0, %v1396
        %1398 = vmatprep.mubr.f32.mxu0 0.0
        %1399 = vmatmul.mubr.f32.gmra.mrb[0].mxu0 %v1189
        %v1400 = vpop.f32.mrb[0].mxu0
        %v1401 = vadd.f32 0.0, %v1400
        %v1402 = vpop.f32.mrb[0].mxu0
        %v1403 = vadd.f32 0.0, %v1402
        %1404 = vmatprep.mubr.f32.mxu0 0.0
        %1405 = vmatmul.mubr.f32.gmra.mrb[0].mxu0 %v1192
        %v1406 = vpop.f32.mrb[0].mxu0
        %v1407 = vadd.f32 0.0, %v1406
        %v1408 = vpop.f32.mrb[0].mxu0
        %v1409 = vadd.f32 0.0, %v1408
        %1410 = vmatprep.mubr.f32.mxu0 0.0
        %1411 = vmatmul.mubr.f32.gmra.mrb[0].mxu0 %v1195
        %v1412 = vpop.f32.mrb[0].mxu0
        %v1413 = vadd.f32 0.0, %v1412
        %v1414 = vpop.f32.mrb[0].mxu0
        %v1415 = vadd.f32 0.0, %v1414
        %1416 = vmatprep.mubr.f32.mxu0 0.0
        %1417 = vmatmul.mubr.f32.gmra.mrb[0].mxu0 %v1198
        %v1418 = vpop.f32.mrb[0].mxu0
        %v1419 = vadd.f32 0.0, %v1418
        %v1420 = vpop.f32.mrb[0].mxu0
        %v1421 = vadd.f32 0.0, %v1420
        %1422 = vmatprep.mubr.f32.mxu0 0.0
        %1423 = vmatmul.mubr.f32.gmra.mrb[0].mxu0 %v1201
        %v1424 = vpop.f32.mrb[0].mxu0
        %v1425 = vadd.f32 0.0, %v1424
        %v1426 = vpop.f32.mrb[0].mxu0
        %v1427 = vadd.f32 0.0, %v1426
        %1428 = vdwg.mxu0
        %v1429 = vmul.f32 %v1114, %v1162
        %v1430 = vmul.f32 %v1115, %v1163
        %v1431 = vmul.f32 %v1116, %v1164
        %v1432 = vmul.f32 %v1117, %v1165
        %v1433 = vmul.f32 %v1118, %v1166
        %v1434 = vmul.f32 %v1119, %v1167
        %v1435 = vmul.f32 %v1120, %v1168
        %v1436 = vmul.f32 %v1121, %v1169
        %v1438 = vsel %vm1178, %v1429, 0
        %v1441 = vsel %vm1178, %v1430, 0
        %v1444 = vsel %vm1178, %v1431, 0
        %v1447 = vsel %vm1178, %v1432, 0
        %v1450 = vsel %vm1178, %v1433, 0
        %v1453 = vsel %vm1178, %v1434, 0
        %v1456 = vsel %vm1178, %v1435, 0
        %v1459 = vsel %vm1178, %v1436, 0
        %1461 = vmatprep.subr.mxu0 %v1171
        %1462 = vmatpush1.msra.mxu0 %v1170
        %1463 = vmatprep.subr.mxu0 %v1175
        %1464 = vmatpush1.msra.mxu0 %v1174
        %1465 = vmatprep.subr.mxu0 0.0
        %1466 = vmatpush1.msra.mxu0 0.0
        %1467 = vmatprep.subr.mxu0 0.0
        %1468 = vmatpush1.msra.mxu0 0.0
        %1469 = vmatprep.subr.mxu0 0.0
        %1470 = vmatpush1.msra.mxu0 0.0
        %1471 = vmatprep.subr.mxu0 0.0
        %1472 = vmatpush1.msra.mxu0 0.0
        %1473 = vmatprep.subr.mxu0 0.0
        %1474 = vmatpush1.msra.mxu0 0.0
        %1475 = vmatprep.subr.mxu0 0.0
        %1476 = vmatpush1.msra.mxu0 0.0
        %1477 = vmatprep.subr.mxu0 0.0
        %1478 = vmatpush1.msra.mxu0 0.0
        %1479 = vmatprep.subr.mxu0 0.0
        %1480 = vmatpush1.msra.mxu0 0.0
        %1481 = vmatprep.subr.mxu0 0.0
        %1482 = vmatpush1.msra.mxu0 0.0
        %1483 = vmatprep.subr.mxu0 0.0
        %1484 = vmatpush1.msra.mxu0 0.0
        %1485 = vmatprep.subr.mxu0 0.0
        %1486 = vmatpush1.msra.mxu0 0.0
        %1487 = vmatprep.subr.mxu0 0.0
        %1488 = vmatpush1.msra.mxu0 0.0
        %1489 = vmatprep.subr.mxu0 0.0
        %1490 = vmatpush1.msra.mxu0 0.0
        %1491 = vmatprep.subr.mxu0 0.0
        %1492 = vmatpush1.msra.mxu0 0.0
        %1493 = vmatprep.subr.mxu0 0.0
        %1494 = vmatpush1.msra.mxu0 0.0
        %1495 = vmatprep.subr.mxu0 0.0
        %1496 = vmatpush1.msra.mxu0 0.0
        %1497 = vmatprep.subr.mxu0 0.0
        %1498 = vmatpush1.msra.mxu0 0.0
        %1499 = vmatprep.subr.mxu0 0.0
        %1500 = vmatpush1.msra.mxu0 0.0
        %1501 = vmatprep.subr.mxu0 0.0
        %1502 = vmatpush1.msra.mxu0 0.0
        %1503 = vmatprep.subr.mxu0 0.0
        %1504 = vmatpush1.msra.mxu0 0.0
        %1505 = vmatprep.subr.mxu0 0.0
        %1506 = vmatpush1.msra.mxu0 0.0
        %1507 = vmatprep.subr.mxu0 0.0
        %1508 = vmatpush1.msra.mxu0 0.0
        %1509 = vmatprep.subr.mxu0 0.0
        %1510 = vmatpush1.msra.mxu0 0.0
        %1511 = vmatprep.subr.mxu0 0.0
        %1512 = vmatpush1.msra.mxu0 0.0
        %1513 = vmatprep.subr.mxu0 0.0
        %1514 = vmatpush1.msra.mxu0 0.0
        %1515 = vmatprep.subr.mxu0 0.0
        %1516 = vmatpush1.msra.mxu0 0.0
        %1517 = vmatprep.subr.mxu0 0.0
        %1518 = vmatpush1.msra.mxu0 0.0
        %1519 = vmatprep.subr.mxu0 0.0
        %1520 = vmatpush1.msra.mxu0 0.0
        %1521 = vmatprep.subr.mxu0 0.0
        %1522 = vmatpush1.msra.mxu0 0.0
        %1523 = vmatprep.subr.mxu0 0.0
        %1524 = vmatpush1.msra.mxu0 0.0
        %1525 = vmatprep.mubr.f32.mxu0 0.0
        %1526 = vmatmul.mubr.f32.gmra.mrb[0].mxu0 %v1438
        %v1527 = vpop.f32.mrb[0].mxu0
        %v1528 = vadd.f32 0.0, %v1527
        %v1529 = vpop.f32.mrb[0].mxu0
        %v1530 = vadd.f32 0.0, %v1529
        %1531 = vmatprep.mubr.f32.mxu0 0.0
        %1532 = vmatmul.mubr.f32.gmra.mrb[0].mxu0 %v1441
        %v1533 = vpop.f32.mrb[0].mxu0
        %v1534 = vadd.f32 0.0, %v1533
        %v1535 = vpop.f32.mrb[0].mxu0
        %v1536 = vadd.f32 0.0, %v1535
        %1537 = vmatprep.mubr.f32.mxu0 0.0
        %1538 = vmatmul.mubr.f32.gmra.mrb[0].mxu0 %v1444
        %v1539 = vpop.f32.mrb[0].mxu0
        %v1540 = vadd.f32 0.0, %v1539
        %v1541 = vpop.f32.mrb[0].mxu0
        %v1542 = vadd.f32 0.0, %v1541
        %1543 = vmatprep.mubr.f32.mxu0 0.0
        %1544 = vmatmul.mubr.f32.gmra.mrb[0].mxu0 %v1447
        %v1545 = vpop.f32.mrb[0].mxu0
        %v1546 = vadd.f32 0.0, %v1545
        %v1547 = vpop.f32.mrb[0].mxu0
        %v1548 = vadd.f32 0.0, %v1547
        %1549 = vmatprep.mubr.f32.mxu0 0.0
        %1550 = vmatmul.mubr.f32.gmra.mrb[0].mxu0 %v1450
        %v1551 = vpop.f32.mrb[0].mxu0
        %v1552 = vadd.f32 0.0, %v1551
        %v1553 = vpop.f32.mrb[0].mxu0
        %v1554 = vadd.f32 0.0, %v1553
        %1555 = vmatprep.mubr.f32.mxu0 0.0
        %1556 = vmatmul.mubr.f32.gmra.mrb[0].mxu0 %v1453
        %v1557 = vpop.f32.mrb[0].mxu0
        %v1558 = vadd.f32 0.0, %v1557
        %v1559 = vpop.f32.mrb[0].mxu0
        %v1560 = vadd.f32 0.0, %v1559
        %1561 = vmatprep.mubr.f32.mxu0 0.0
        %1562 = vmatmul.mubr.f32.gmra.mrb[0].mxu0 %v1456
        %v1563 = vpop.f32.mrb[0].mxu0
        %v1564 = vadd.f32 0.0, %v1563
        %v1565 = vpop.f32.mrb[0].mxu0
        %v1566 = vadd.f32 0.0, %v1565
        %1567 = vmatprep.mubr.f32.mxu0 0.0
        %1568 = vmatmul.mubr.f32.gmra.mrb[0].mxu0 %v1459
        %v1569 = vpop.f32.mrb[0].mxu0
        %v1570 = vadd.f32 0.0, %v1569
        %v1571 = vpop.f32.mrb[0].mxu0
        %v1572 = vadd.f32 0.0, %v1571
        %1573 = vdwg.mxu0
        %1574 = vmatprep.subr.mxu0 %v1173
        %1575 = vmatpush1.msra.mxu0 %v1172
        %1576 = vmatprep.subr.mxu0 %v1177
        %1577 = vmatpush1.msra.mxu0 %v1176
        %1578 = vmatprep.subr.mxu0 0.0
        %1579 = vmatpush1.msra.mxu0 0.0
        %1580 = vmatprep.subr.mxu0 0.0
        %1581 = vmatpush1.msra.mxu0 0.0
        %1582 = vmatprep.subr.mxu0 0.0
        %1583 = vmatpush1.msra.mxu0 0.0
        %1584 = vmatprep.subr.mxu0 0.0
        %1585 = vmatpush1.msra.mxu0 0.0
        %1586 = vmatprep.subr.mxu0 0.0
        %1587 = vmatpush1.msra.mxu0 0.0
        %1588 = vmatprep.subr.mxu0 0.0
        %1589 = vmatpush1.msra.mxu0 0.0
        %1590 = vmatprep.subr.mxu0 0.0
        %1591 = vmatpush1.msra.mxu0 0.0
        %1592 = vmatprep.subr.mxu0 0.0
        %1593 = vmatpush1.msra.mxu0 0.0
        %1594 = vmatprep.subr.mxu0 0.0
        %1595 = vmatpush1.msra.mxu0 0.0
        %1596 = vmatprep.subr.mxu0 0.0
        %1597 = vmatpush1.msra.mxu0 0.0
        %1598 = vmatprep.subr.mxu0 0.0
        %1599 = vmatpush1.msra.mxu0 0.0
        %1600 = vmatprep.subr.mxu0 0.0
        %1601 = vmatpush1.msra.mxu0 0.0
        %1602 = vmatprep.subr.mxu0 0.0
        %1603 = vmatpush1.msra.mxu0 0.0
        %1604 = vmatprep.subr.mxu0 0.0
        %1605 = vmatpush1.msra.mxu0 0.0
        %1606 = vmatprep.subr.mxu0 0.0
        %1607 = vmatpush1.msra.mxu0 0.0
        %1608 = vmatprep.subr.mxu0 0.0
        %1609 = vmatpush1.msra.mxu0 0.0
        %1610 = vmatprep.subr.mxu0 0.0
        %1611 = vmatpush1.msra.mxu0 0.0
        %1612 = vmatprep.subr.mxu0 0.0
        %1613 = vmatpush1.msra.mxu0 0.0
        %1614 = vmatprep.subr.mxu0 0.0
        %1615 = vmatpush1.msra.mxu0 0.0
        %1616 = vmatprep.subr.mxu0 0.0
        %1617 = vmatpush1.msra.mxu0 0.0
        %1618 = vmatprep.subr.mxu0 0.0
        %1619 = vmatpush1.msra.mxu0 0.0
        %1620 = vmatprep.subr.mxu0 0.0
        %1621 = vmatpush1.msra.mxu0 0.0
        %1622 = vmatprep.subr.mxu0 0.0
        %1623 = vmatpush1.msra.mxu0 0.0
        %1624 = vmatprep.subr.mxu0 0.0
        %1625 = vmatpush1.msra.mxu0 0.0
        %1626 = vmatprep.subr.mxu0 0.0
        %1627 = vmatpush1.msra.mxu0 0.0
        %1628 = vmatprep.subr.mxu0 0.0
        %1629 = vmatpush1.msra.mxu0 0.0
        %1630 = vmatprep.subr.mxu0 0.0
        %1631 = vmatpush1.msra.mxu0 0.0
        %1632 = vmatprep.subr.mxu0 0.0
        %1633 = vmatpush1.msra.mxu0 0.0
        %1634 = vmatprep.subr.mxu0 0.0
        %1635 = vmatpush1.msra.mxu0 0.0
        %1636 = vmatprep.subr.mxu0 0.0
        %1637 = vmatpush1.msra.mxu0 0.0
        %1638 = vmatprep.mubr.f32.mxu0 0.0
        %1639 = vmatmul.mubr.f32.gmra.mrb[0].mxu0 %v1438
        %v1640 = vpop.f32.mrb[0].mxu0
        %v1641 = vadd.f32 0.0, %v1640
        %v1642 = vpop.f32.mrb[0].mxu0
        %v1643 = vadd.f32 0.0, %v1642
        %1644 = vmatprep.mubr.f32.mxu0 0.0
        %1645 = vmatmul.mubr.f32.gmra.mrb[0].mxu0 %v1441
        %v1646 = vpop.f32.mrb[0].mxu0
        %v1647 = vadd.f32 0.0, %v1646
        %v1648 = vpop.f32.mrb[0].mxu0
        %v1649 = vadd.f32 0.0, %v1648
        %1650 = vmatprep.mubr.f32.mxu0 0.0
        %1651 = vmatmul.mubr.f32.gmra.mrb[0].mxu0 %v1444
        %v1652 = vpop.f32.mrb[0].mxu0
        %v1653 = vadd.f32 0.0, %v1652
        %v1654 = vpop.f32.mrb[0].mxu0
        %v1655 = vadd.f32 0.0, %v1654
        %1656 = vmatprep.mubr.f32.mxu0 0.0
        %1657 = vmatmul.mubr.f32.gmra.mrb[0].mxu0 %v1447
        %v1658 = vpop.f32.mrb[0].mxu0
        %v1659 = vadd.f32 0.0, %v1658
        %v1660 = vpop.f32.mrb[0].mxu0
        %v1661 = vadd.f32 0.0, %v1660
        %1662 = vmatprep.mubr.f32.mxu0 0.0
        %1663 = vmatmul.mubr.f32.gmra.mrb[0].mxu0 %v1450
        %v1664 = vpop.f32.mrb[0].mxu0
        %v1665 = vadd.f32 0.0, %v1664
        %v1666 = vpop.f32.mrb[0].mxu0
        %v1667 = vadd.f32 0.0, %v1666
        %1668 = vmatprep.mubr.f32.mxu0 0.0
        %1669 = vmatmul.mubr.f32.gmra.mrb[0].mxu0 %v1453
        %v1670 = vpop.f32.mrb[0].mxu0
        %v1671 = vadd.f32 0.0, %v1670
        %v1672 = vpop.f32.mrb[0].mxu0
        %v1673 = vadd.f32 0.0, %v1672
        %1674 = vmatprep.mubr.f32.mxu0 0.0
        %1675 = vmatmul.mubr.f32.gmra.mrb[0].mxu0 %v1456
        %v1676 = vpop.f32.mrb[0].mxu0
        %v1677 = vadd.f32 0.0, %v1676
        %v1678 = vpop.f32.mrb[0].mxu0
        %v1679 = vadd.f32 0.0, %v1678
        %1680 = vmatprep.mubr.f32.mxu0 0.0
        %1681 = vmatmul.mubr.f32.gmra.mrb[0].mxu0 %v1459
        %v1682 = vpop.f32.mrb[0].mxu0
        %v1683 = vadd.f32 0.0, %v1682
        %v1684 = vpop.f32.mrb[0].mxu0
        %v1685 = vadd.f32 0.0, %v1684
        %1686 = vdwg.mxu0
        %v1687 = vmul.f32 %v439, %v1270
        %v1688 = vmul.f32 %v441, %v1272
        %v1689 = vmul.f32 %v552, %v1383
        %v1690 = vmul.f32 %v554, %v1385
        %v1691 = vmul.f32 %v445, %v1276
        %v1692 = vmul.f32 %v447, %v1278
        %v1693 = vmul.f32 %v558, %v1389
        %v1694 = vmul.f32 %v560, %v1391
        %v1695 = vmul.f32 %v451, %v1282
        %v1696 = vmul.f32 %v453, %v1284
        %v1697 = vmul.f32 %v564, %v1395
        %v1698 = vmul.f32 %v566, %v1397
        %v1699 = vmul.f32 %v457, %v1288
        %v1700 = vmul.f32 %v459, %v1290
        %v1701 = vmul.f32 %v570, %v1401
        %v1702 = vmul.f32 %v572, %v1403
        %v1703 = vmul.f32 %v463, %v1294
        %v1704 = vmul.f32 %v465, %v1296
        %v1705 = vmul.f32 %v576, %v1407
        %v1706 = vmul.f32 %v578, %v1409
        %v1707 = vmul.f32 %v469, %v1300
        %v1708 = vmul.f32 %v471, %v1302
        %v1709 = vmul.f32 %v582, %v1413
        %v1710 = vmul.f32 %v584, %v1415
        %v1711 = vmul.f32 %v475, %v1306
        %v1712 = vmul.f32 %v477, %v1308
        %v1713 = vmul.f32 %v588, %v1419
        %v1714 = vmul.f32 %v590, %v1421
        %v1715 = vmul.f32 %v481, %v1312
        %v1716 = vmul.f32 %v483, %v1314
        %v1717 = vmul.f32 %v594, %v1425
        %v1718 = vmul.f32 %v596, %v1427
        %v1719 = vsub.f32 %v1687, %v1528
        %v1720 = vsub.f32 %v1688, %v1530
        %v1721 = vsub.f32 %v1689, %v1641
        %v1722 = vsub.f32 %v1690, %v1643
        %v1723 = vsub.f32 %v1691, %v1534
        %v1724 = vsub.f32 %v1692, %v1536
        %v1725 = vsub.f32 %v1693, %v1647
        %v1726 = vsub.f32 %v1694, %v1649
        %v1727 = vsub.f32 %v1695, %v1540
        %v1728 = vsub.f32 %v1696, %v1542
        %v1729 = vsub.f32 %v1697, %v1653
        %v1730 = vsub.f32 %v1698, %v1655
        %v1731 = vsub.f32 %v1699, %v1546
        %v1732 = vsub.f32 %v1700, %v1548
        %v1733 = vsub.f32 %v1701, %v1659
        %v1734 = vsub.f32 %v1702, %v1661
        %v1735 = vsub.f32 %v1703, %v1552
        %v1736 = vsub.f32 %v1704, %v1554
        %v1737 = vsub.f32 %v1705, %v1665
        %v1738 = vsub.f32 %v1706, %v1667
        %v1739 = vsub.f32 %v1707, %v1558
        %v1740 = vsub.f32 %v1708, %v1560
        %v1741 = vsub.f32 %v1709, %v1671
        %v1742 = vsub.f32 %v1710, %v1673
        %v1743 = vsub.f32 %v1711, %v1564
        %v1744 = vsub.f32 %v1712, %v1566
        %v1745 = vsub.f32 %v1713, %v1677
        %v1746 = vsub.f32 %v1714, %v1679
        %v1747 = vsub.f32 %v1715, %v1570
        %v1748 = vsub.f32 %v1716, %v1572
        %v1749 = vsub.f32 %v1717, %v1683
        %v1750 = vsub.f32 %v1718, %v1685
        %v1751 = vld [vmem:[%s4] sm:$0xf]
        %v1753 = vlaneseq
        %v1754 = vshrl.u32 %v1753, 7
        %v1755 = vsub.s32 0, %v1754
        %v1756 = vrot.slane %v1751, %v1755
        %v1757 = vlaneseq
        %v1758 = vshrl.u32 %v1757, 7
        %v1759 = vsub.s32 1, %v1758
        %v1760 = vrot.slane %v1751, %v1759
        %v1761 = vlaneseq
        %v1762 = vshrl.u32 %v1761, 7
        %v1763 = vsub.s32 2, %v1762
        %v1764 = vrot.slane %v1751, %v1763
        %v1765 = vlaneseq
        %v1766 = vshrl.u32 %v1765, 7
        %v1767 = vsub.s32 3, %v1766
        %v1768 = vrot.slane %v1751, %v1767
        %v1773 = vmul.f32 %v1719, %v1756
        %v1774 = vmul.f32 %v1720, %v1760
        %v1775 = vmul.f32 %v1721, %v1764
        %v1776 = vmul.f32 %v1722, %v1768
        %v1777 = vmul.f32 %v1723, %v1756
        %v1778 = vmul.f32 %v1724, %v1760
        %v1779 = vmul.f32 %v1725, %v1764
        %v1780 = vmul.f32 %v1726, %v1768
        %v1781 = vmul.f32 %v1727, %v1756
        %v1782 = vmul.f32 %v1728, %v1760
        %v1783 = vmul.f32 %v1729, %v1764
        %v1784 = vmul.f32 %v1730, %v1768
        %v1785 = vmul.f32 %v1731, %v1756
        %v1786 = vmul.f32 %v1732, %v1760
        %v1787 = vmul.f32 %v1733, %v1764
        %v1788 = vmul.f32 %v1734, %v1768
        %v1789 = vmul.f32 %v1735, %v1756
        %v1790 = vmul.f32 %v1736, %v1760
        %v1791 = vmul.f32 %v1737, %v1764
        %v1792 = vmul.f32 %v1738, %v1768
        %v1793 = vmul.f32 %v1739, %v1756
        %v1794 = vmul.f32 %v1740, %v1760
        %v1795 = vmul.f32 %v1741, %v1764
        %v1796 = vmul.f32 %v1742, %v1768
        %v1797 = vmul.f32 %v1743, %v1756
        %v1798 = vmul.f32 %v1744, %v1760
        %v1799 = vmul.f32 %v1745, %v1764
        %v1800 = vmul.f32 %v1746, %v1768
        %v1801 = vmul.f32 %v1747, %v1756
        %v1802 = vmul.f32 %v1748, %v1760
        %v1803 = vmul.f32 %v1749, %v1764
        %v1804 = vmul.f32 %v1750, %v1768
        %v1805 = vld [vmem:[%s5] sm:$0xf]
        %v1807 = vlaneseq
        %v1808 = vshrl.u32 %v1807, 7
        %v1809 = vsub.s32 0, %v1808
        %v1810 = vrot.slane %v1805, %v1809
        %v1811 = vlaneseq
        %v1812 = vshrl.u32 %v1811, 7
        %v1813 = vsub.s32 1, %v1812
        %v1814 = vrot.slane %v1805, %v1813
        %v1815 = vlaneseq
        %v1816 = vshrl.u32 %v1815, 7
        %v1817 = vsub.s32 2, %v1816
        %v1818 = vrot.slane %v1805, %v1817
        %v1819 = vlaneseq
        %v1820 = vshrl.u32 %v1819, 7
        %v1821 = vsub.s32 3, %v1820
        %v1822 = vrot.slane %v1805, %v1821
        %v1827 = vadd.f32 %v1773, %v1810
        %v1828 = vadd.f32 %v1774, %v1814
        %v1829 = vadd.f32 %v1775, %v1818
        %v1830 = vadd.f32 %v1776, %v1822
        %v1831 = vadd.f32 %v1777, %v1810
        %v1832 = vadd.f32 %v1778, %v1814
        %v1833 = vadd.f32 %v1779, %v1818
        %v1834 = vadd.f32 %v1780, %v1822
        %v1835 = vadd.f32 %v1781, %v1810
        %v1836 = vadd.f32 %v1782, %v1814
        %v1837 = vadd.f32 %v1783, %v1818
        %v1838 = vadd.f32 %v1784, %v1822
        %v1839 = vadd.f32 %v1785, %v1810
        %v1840 = vadd.f32 %v1786, %v1814
        %v1841 = vadd.f32 %v1787, %v1818
        %v1842 = vadd.f32 %v1788, %v1822
        %v1843 = vadd.f32 %v1789, %v1810
        %v1844 = vadd.f32 %v1790, %v1814
        %v1845 = vadd.f32 %v1791, %v1818
        %v1846 = vadd.f32 %v1792, %v1822
        %v1847 = vadd.f32 %v1793, %v1810
        %v1848 = vadd.f32 %v1794, %v1814
        %v1849 = vadd.f32 %v1795, %v1818
        %v1850 = vadd.f32 %v1796, %v1822
        %v1851 = vadd.f32 %v1797, %v1810
        %v1852 = vadd.f32 %v1798, %v1814
        %v1853 = vadd.f32 %v1799, %v1818
        %v1854 = vadd.f32 %v1800, %v1822
        %v1855 = vadd.f32 %v1801, %v1810
        %v1856 = vadd.f32 %v1802, %v1814
        %v1857 = vadd.f32 %v1803, %v1818
        %v1858 = vadd.f32 %v1804, %v1822
        %1859 = vst [vmem:[%s320] sm:$0xff] %v1827
        %1860 = vst [vmem:[%s320 + $0x8] sm:$0xff] %v1828
        %1861 = vst [vmem:[%s320 + $0x10] sm:$0xff] %v1829
        %1862 = vst [vmem:[%s320 + $0x18] sm:$0xff] %v1830
        %1863 = vst [vmem:[%s320 + $0x20] sm:$0xff] %v1831
        %1864 = vst [vmem:[%s320 + $0x28] sm:$0xff] %v1832
        %1865 = vst [vmem:[%s320 + $0x30] sm:$0xff] %v1833
        %1866 = vst [vmem:[%s320 + $0x38] sm:$0xff] %v1834
        %1867 = vst [vmem:[%s320 + $0x40] sm:$0xff] %v1835
        %1868 = vst [vmem:[%s320 + $0x48] sm:$0xff] %v1836
        %1869 = vst [vmem:[%s320 + $0x50] sm:$0xff] %v1837
        %1870 = vst [vmem:[%s320 + $0x58] sm:$0xff] %v1838
        %1871 = vst [vmem:[%s320 + $0x60] sm:$0xff] %v1839
        %1872 = vst [vmem:[%s320 + $0x68] sm:$0xff] %v1840
        %1873 = vst [vmem:[%s320 + $0x70] sm:$0xff] %v1841
        %1874 = vst [vmem:[%s320 + $0x78] sm:$0xff] %v1842
        %1875 = vst [vmem:[%s320 + $0x80] sm:$0xff] %v1843
        %1876 = vst [vmem:[%s320 + $0x88] sm:$0xff] %v1844
        %1877 = vst [vmem:[%s320 + $0x90] sm:$0xff] %v1845
        %1878 = vst [vmem:[%s320 + $0x98] sm:$0xff] %v1846
        %1879 = vst [vmem:[%s320 + $0xa0] sm:$0xff] %v1847
        %1880 = vst [vmem:[%s320 + $0xa8] sm:$0xff] %v1848
        %1881 = vst [vmem:[%s320 + $0xb0] sm:$0xff] %v1849
        %1882 = vst [vmem:[%s320 + $0xb8] sm:$0xff] %v1850
        %1883 = vst [vmem:[%s320 + $0xc0] sm:$0xff] %v1851
        %1884 = vst [vmem:[%s320 + $0xc8] sm:$0xff] %v1852
        %1885 = vst [vmem:[%s320 + $0xd0] sm:$0xff] %v1853
        %1886 = vst [vmem:[%s320 + $0xd8] sm:$0xff] %v1854
        %1887 = vst [vmem:[%s320 + $0xe0] sm:$0xff] %v1855
        %1888 = vst [vmem:[%s320 + $0xe8] sm:$0xff] %v1856
        %1889 = vst [vmem:[%s320 + $0xf0] sm:$0xff] %v1857
        %1890 = vst [vmem:[%s320 + $0xf8] sm:$0xff] %v1858
        %s1891 = smul.u32 8, %s25
        %s1892 = smul.u32 4, %s26
        %p1893 = scmp.lt.s32.totalorder %s1891, 63
        %s1894 = scalar_select %p1893, %s1891, 63
        %p1895 = scmp.lt.s32.totalorder %s1892, 3
        %s1896 = scalar_select %p1895, %s1892, 3
        %s1897 = smul.addr %s1894, 4
        %s1898 = sadd.s32 %s1896, %s1897
        %s1899 = smul.addr %s1898, 8
        %s1900 = scalar_lea.vmem %s6, %s1899
        // Predicated region
        $region53: #{final_patch_expand_x4_forward.1} parent=43 // pred_check
          %p1901 = pneg %p189
        $region54: #{final_patch_expand_x4_forward.1} parent=43 // pred_check_branch
          %1903 = sbr.rel (%p1901) target = $region56
        $region55: #{final_patch_expand_x4_forward.1} parent=43 // pred_region
          %s1904 = smul.u32 8, %s25
          %s1905 = smul.u32 4, %s26
        $region56: #{final_patch_expand_x4_forward.1} parent=43 // pred_fallthru
          _
      $region44: #{final_patch_expand_x4_forward.1} parent=5 // pred_fallthru
        _
      %p1906 = scmp.le.s32.totalorder 2, %s16
      // Predicated region
      $region57: #{final_patch_expand_x4_forward.1} parent=5 // pred_check
        %p1907 = pneg %p1906
      $region58: #{final_patch_expand_x4_forward.1} parent=5 // pred_check_branch
        %1909 = sbr.rel (%p1907) target = $region60
      $region59: #{final_patch_expand_x4_forward.1} parent=5 // pred_region
        %s1910 = ssub.s32 %s16, 2
        // Predicated region
        $region61: #{final_patch_expand_x4_forward.1} parent=59 // pred_check
          %p1911 = pneg %p195
        $region62: #{final_patch_expand_x4_forward.1} parent=59 // pred_check_branch
          %1913 = sbr.rel (%p1911) target = $region64
        $region63: #{final_patch_expand_x4_forward.1} parent=59 // pred_region
          %s1914 = smul.u32 8, %s27
          %s1915 = smul.u32 4, %s28
          %p1916 = scmp.lt.s32.totalorder %s1914, 63
          %s1917 = scalar_select %p1916, %s1914, 63
          %p1918 = scmp.lt.s32.totalorder %s1915, 3
          %s1919 = scalar_select %p1918, %s1915, 3
          %s1920 = smul.addr %s1917, 4
          %s1921 = sadd.s32 %s1919, %s1920
          %s1922 = smul.addr %s1921, 8
          %s1923 = scalar_lea.vmem %s6, %s1922
        $region64: #{final_patch_expand_x4_forward.1} parent=59 // pred_fallthru
          _
      $region60: #{final_patch_expand_x4_forward.1} parent=5 // pred_fallthru
        _
    $region6: #{final_patch_expand_x4_forward.1} parent=1 // loop_footer
      %s20 = sadd.s32 1, %s16
    $region7: #{final_patch_expand_x4_forward.1} parent=1 // loop_footer_branch
      %15 = sbr.rel target = $region3
    $region8: #{final_patch_expand_x4_forward.1} parent=1 // loop_exit
      _
    %1924 = vsyncpa [#allocation3], 1
    %s1925 = scalar_lea.sflag [#allocation3], 1
    %1926 = vsyncpa %s1925, 1
    %1927 = vsyncpa [#allocation5], 1

</llo_original>
